<compile_context>
chip_gen: v7x
topology: tpu7x:2x2x1
jax: 0.10.0
libtpu: 0.0.40
codegen_flags: <defaults>
</compile_context>

<pallas_src>
import jax
import jax.numpy as jnp
from jax.experimental import pallas as pl
from jax.experimental.pallas import tpu as pltpu

# ---------------- small RoBERTa-like config (toy dims, lane-dense) ----------
VOCAB = 100
HIDDEN = 128          # feat_dim (real CodeBERT: 768) — multiple of 128 lanes
N_HEADS = 2
HEAD_DIM = HIDDEN // N_HEADS
FFN = 4 * HIDDEN      # 512
N_LAYERS = 2
NB_CLASS = 2
CLS_PAD = 128         # classifier logits computed into a lane-dense slab
MAX_POS = 64
PAD_IDX = 1
LN_EPS = 1e-5

BATCH = 2
SEQ = 8


# ---------------- in-kernel helpers ------------------------------------------
def _layernorm(x, g, b):
    mean = jnp.mean(x, axis=-1, keepdims=True)
    xc = x - mean
    var = jnp.mean(xc * xc, axis=-1, keepdims=True)
    return xc * jax.lax.rsqrt(var + LN_EPS) * g + b


def _mm(x_f32, w_bf16, b_f32):
    # bf16 operands on the MXU, f32 accumulation, f32 bias add.
    return jnp.dot(x_f32.astype(jnp.bfloat16), w_bf16,
                   preferred_element_type=jnp.float32) + b_f32


# ---------------- fused encoder kernel ----------------------------------------
def encoder_kernel(h_emb_ref, emb_g_ref, emb_b_ref, mask_ref,
                   wqkv_ref, bqkv_ref, wo_ref, bo_ref,
                   ln1_g_ref, ln1_b_ref, w1_ref, b1_ref, w2_ref, b2_ref,
                   ln2_g_ref, ln2_b_ref, clsw_ref, clsb_ref,
                   logits_ref, h_scratch):
    layer = pl.program_id(0)
    n_tok = h_scratch.shape[0]            # B * S
    batch = logits_ref.shape[0]
    seq = n_tok // batch

    # layer 0: embedding LayerNorm, park activations in VMEM scratch
    @pl.when(layer == 0)
    def _():
        h_scratch[...] = _layernorm(h_emb_ref[...], emb_g_ref[...],
                                    emb_b_ref[...])

    h = h_scratch[...]                                      # (B*S, HIDDEN) f32

    # ---- self attention (fused QKV projection; heads = static lane slices) --
    qkv = _mm(h, wqkv_ref[...], bqkv_ref[...])              # (B*S, 3*HIDDEN)
    scale = 1.0 / (HEAD_DIM ** 0.5)
    mask = mask_ref[...]                                    # (B*S, B*S) additive
    heads = []
    for hh in range(N_HEADS):
        lo = hh * HEAD_DIM
        q = qkv[:, lo:lo + HEAD_DIM]
        k = qkv[:, HIDDEN + lo:HIDDEN + lo + HEAD_DIM]
        v = qkv[:, 2 * HIDDEN + lo:2 * HIDDEN + lo + HEAD_DIM]
        s = jax.lax.dot_general(q.astype(jnp.bfloat16), k.astype(jnp.bfloat16),
                                (((1,), (1,)), ((), ())),
                                preferred_element_type=jnp.float32)
        s = s * scale + mask
        s = s - jnp.max(s, axis=-1, keepdims=True)
        p = jnp.exp(s)
        p = p * pl.reciprocal(jnp.sum(p, axis=-1, keepdims=True), approx=True)
        heads.append(jnp.dot(p.astype(jnp.bfloat16), v.astype(jnp.bfloat16),
                             preferred_element_type=jnp.float32))
    attn = jnp.concatenate(heads, axis=-1)                  # (B*S, HIDDEN)

    attn = _mm(attn, wo_ref[...], bo_ref[...])
    h = _layernorm(h + attn, ln1_g_ref[...], ln1_b_ref[...])    # post-LN

    # ---- feed forward --------------------------------------------------------
    f = _mm(h, w1_ref[...], b1_ref[...])
    # TODO(synk): RoBERTa/CodeBERT use erf-GELU; tanh approximation used here
    # for EUP-friendly lowering (small systematic numeric drift vs PyTorch).
    f = jax.nn.gelu(f, approximate=True)
    f = _mm(f, w2_ref[...], b2_ref[...])
    h = _layernorm(h + f, ln2_g_ref[...], ln2_b_ref[...])

    h_scratch[...] = h

    # last layer: classifier on the [CLS] rows, written to a lane-dense slab
    @pl.when(layer == pl.num_programs(0) - 1)
    def _():
        cls_rows = [h[b * seq:b * seq + 1, :] for b in range(batch)]
        cls = jnp.concatenate(cls_rows, axis=0)             # (B, HIDDEN)
        logits_ref[...] = _mm(cls, clsw_ref[...], clsb_ref[...])


# ---------------- parameter init (deterministic, synthetic) -------------------
def init_params(key):
    # TODO(synk): pretrained CodeBERT weights / RobertaTokenizer are not
    # loadable here; encoder weights are synthetic-deterministic at toy dims.
    def norm(k, shape):
        return jax.random.normal(k, shape, jnp.float32) * 0.02

    ks = jax.random.split(key, 8)
    cls_w = norm(ks[7], (HIDDEN, NB_CLASS))
    cls_w_pad = jnp.zeros((HIDDEN, CLS_PAD), jnp.float32).at[:, :NB_CLASS].set(cls_w)
    return {
        'word_emb': norm(ks[0], (VOCAB, HIDDEN)),
        'pos_emb': norm(ks[1], (MAX_POS, HIDDEN)),
        'type_emb': norm(ks[2], (1, HIDDEN)),
        'emb_ln_g': jnp.ones((1, HIDDEN), jnp.float32),
        'emb_ln_b': jnp.zeros((1, HIDDEN), jnp.float32),
        # per-layer weights stacked on a leading layer axis; matmul weights bf16
        'wqkv': norm(ks[3], (N_LAYERS, HIDDEN, 3 * HIDDEN)).astype(jnp.bfloat16),
        'bqkv': jnp.zeros((N_LAYERS, 1, 3 * HIDDEN), jnp.float32),
        'wo': norm(ks[4], (N_LAYERS, HIDDEN, HIDDEN)).astype(jnp.bfloat16),
        'bo': jnp.zeros((N_LAYERS, 1, HIDDEN), jnp.float32),
        'ln1_g': jnp.ones((N_LAYERS, 1, HIDDEN), jnp.float32),
        'ln1_b': jnp.zeros((N_LAYERS, 1, HIDDEN), jnp.float32),
        'w1': norm(ks[5], (N_LAYERS, HIDDEN, FFN)).astype(jnp.bfloat16),
        'b1': jnp.zeros((N_LAYERS, 1, FFN), jnp.float32),
        'w2': norm(ks[6], (N_LAYERS, FFN, HIDDEN)).astype(jnp.bfloat16),
        'b2': jnp.zeros((N_LAYERS, 1, HIDDEN), jnp.float32),
        'ln2_g': jnp.ones((N_LAYERS, 1, HIDDEN), jnp.float32),
        'ln2_b': jnp.zeros((N_LAYERS, 1, HIDDEN), jnp.float32),
        'cls_w_pad': cls_w_pad.astype(jnp.bfloat16),
        'cls_b_pad': jnp.zeros((1, CLS_PAD), jnp.float32),
    }


# ---------------- forward pass (embeddings in glue JAX, encoder fused) -------
def create_position_ids(input_ids):
    # RoBERTa-style position ids: cumsum over non-pad tokens, offset by pad idx.
    mask = (input_ids != PAD_IDX).astype(jnp.int32)
    return jnp.cumsum(mask, axis=1) * mask + PAD_IDX


def codebert_classifier_forward(params, input_ids, attention_mask):
    B, S = input_ids.shape
    pos_ids = create_position_ids(input_ids)

    # embeddings (table gathers stay in glue JAX / XLA)
    h = (params['word_emb'][input_ids]
         + params['pos_emb'][pos_ids]
         + params['type_emb'][0])
    h = h.reshape(B * S, HIDDEN).astype(jnp.float32)

    # block-diagonal additive mask on the flat (B*S) token axis:
    # a query may only attend to non-pad keys of its own sequence.
    tok_batch = jnp.arange(B * S) // S
    same_seq = tok_batch[:, None] == tok_batch[None, :]
    key_ok = same_seq & (attention_mask.reshape(-1)[None, :] == 1)
    mask2d = jnp.where(key_ok, 0.0, -1e9).astype(jnp.float32)

    def lspec(*shape):   # per-layer stacked weight: pick slice `l`, squeeze it
        return pl.BlockSpec((None,) + shape,
                            lambda l, _s=shape: (l,) + (0,) * len(_s))

    def const2(shape):   # layer-invariant input: stays resident across the grid
        return pl.BlockSpec(shape, lambda l: (0, 0))

    grid_spec = pltpu.PrefetchScalarGridSpec(
        num_scalar_prefetch=0,
        grid=(N_LAYERS,),
        in_specs=[
            const2((B * S, HIDDEN)),        # h_emb
            const2((1, HIDDEN)),            # emb_ln_g
            const2((1, HIDDEN)),            # emb_ln_b
            const2((B * S, B * S)),         # mask2d
            lspec(HIDDEN, 3 * HIDDEN),      # wqkv
            lspec(1, 3 * HIDDEN),           # bqkv
            lspec(HIDDEN, HIDDEN),          # wo
            lspec(1, HIDDEN),               # bo
            lspec(1, HIDDEN),               # ln1_g
            lspec(1, HIDDEN),               # ln1_b
            lspec(HIDDEN, FFN),             # w1
            lspec(1, FFN),                  # b1
            lspec(FFN, HIDDEN),             # w2
            lspec(1, HIDDEN),               # b2
            lspec(1, HIDDEN),               # ln2_g
            lspec(1, HIDDEN),               # ln2_b
            const2((HIDDEN, CLS_PAD)),      # cls_w (zero-padded to 128 lanes)
            const2((1, CLS_PAD)),           # cls_b (padded)
        ],
        out_specs=pl.BlockSpec((B, CLS_PAD), lambda l: (0, 0)),
        scratch_shapes=[pltpu.VMEM((B * S, HIDDEN), jnp.float32)],
    )

    logits_pad = pl.pallas_call(
        encoder_kernel,
        out_shape=jax.ShapeDtypeStruct((B, CLS_PAD), jnp.float32),
        grid_spec=grid_spec,
        compiler_params=pltpu.CompilerParams(
            dimension_semantics=("arbitrary",)),   # h carried across layers
    )(h, params['emb_ln_g'], params['emb_ln_b'], mask2d,
      params['wqkv'], params['bqkv'], params['wo'], params['bo'],
      params['ln1_g'], params['ln1_b'], params['w1'], params['b1'],
      params['w2'], params['b2'], params['ln2_g'], params['ln2_b'],
      params['cls_w_pad'], params['cls_b_pad'])

    return logits_pad[:, :NB_CLASS]


if __name__ == "__main__":
    key = jax.random.PRNGKey(0)
    pkey, ikey = jax.random.split(key)
    params = init_params(pkey)

    input_ids = jax.random.randint(ikey, (BATCH, SEQ), 2, VOCAB, dtype=jnp.int32)
    attention_mask = jnp.ones((BATCH, SEQ), dtype=jnp.int32)
    # simulate padding on the last two tokens of the second sequence
    attention_mask = attention_mask.at[1, -2:].set(0)
    input_ids = jnp.where(attention_mask == 1, input_ids, PAD_IDX)

    fwd = jax.jit(codebert_classifier_forward)
    logits = fwd(params, input_ids, attention_mask)
    logits = jax.block_until_ready(logits)
    assert logits.shape == (BATCH, NB_CLASS)
    print("KERNEL_OK")
</pallas_src>

<mosaic_0001>
module attributes {stable_mosaic.version = 11 : i64} {
  func.func @encoder_kernel(%arg0: i32, %arg1: memref<16x128xf32, #tpu.memory_space<vmem>>, %arg2: memref<1x128xf32, #tpu.memory_space<vmem>>, %arg3: memref<1x128xf32, #tpu.memory_space<vmem>>, %arg4: memref<16x16xf32, #tpu.memory_space<vmem>>, %arg5: memref<1x128x384xbf16, #tpu.memory_space<vmem>>, %arg6: memref<1x1x384xf32, #tpu.memory_space<vmem>>, %arg7: memref<1x128x128xbf16, #tpu.memory_space<vmem>>, %arg8: memref<1x1x128xf32, #tpu.memory_space<vmem>>, %arg9: memref<1x1x128xf32, #tpu.memory_space<vmem>>, %arg10: memref<1x1x128xf32, #tpu.memory_space<vmem>>, %arg11: memref<1x128x512xbf16, #tpu.memory_space<vmem>>, %arg12: memref<1x1x512xf32, #tpu.memory_space<vmem>>, %arg13: memref<1x512x128xbf16, #tpu.memory_space<vmem>>, %arg14: memref<1x1x128xf32, #tpu.memory_space<vmem>>, %arg15: memref<1x1x128xf32, #tpu.memory_space<vmem>>, %arg16: memref<1x1x128xf32, #tpu.memory_space<vmem>>, %arg17: memref<128x128xbf16, #tpu.memory_space<vmem>>, %arg18: memref<1x128xf32, #tpu.memory_space<vmem>>, %arg19: memref<2x128xf32, #tpu.memory_space<vmem>>, %arg20: memref<16x128xf32, #tpu.memory_space<vmem>>) attributes {dimension_semantics = [#tpu.dimension_semantics<arbitrary>], iteration_bounds = array<i64: 2>, scalar_prefetch = 0 : i64, scratch_operands = 1 : i64, tpu.core_type = #tpu.core_type<tc>, window_params = [{pipeline_mode = #tpu.pipeline_mode<synchronous>, transform_indices = @transform_0, window_bounds = array<i64: 16, 128>}, {pipeline_mode = #tpu.pipeline_mode<synchronous>, transform_indices = @transform_1, window_bounds = array<i64: 1, 128>}, {pipeline_mode = #tpu.pipeline_mode<synchronous>, transform_indices = @transform_2, window_bounds = array<i64: 1, 128>}, {pipeline_mode = #tpu.pipeline_mode<synchronous>, transform_indices = @transform_3, window_bounds = array<i64: 16, 16>}, {transform_indices = @transform_4, window_bounds = array<i64: 1, 128, 384>}, {transform_indices = @transform_5, window_bounds = array<i64: 1, 1, 384>}, {transform_indices = @transform_6, window_bounds = array<i64: 1, 128, 128>}, {transform_indices = @transform_7, window_bounds = array<i64: 1, 1, 128>}, {transform_indices = @transform_8, window_bounds = array<i64: 1, 1, 128>}, {transform_indices = @transform_9, window_bounds = array<i64: 1, 1, 128>}, {transform_indices = @transform_10, window_bounds = array<i64: 1, 128, 512>}, {transform_indices = @transform_11, window_bounds = array<i64: 1, 1, 512>}, {transform_indices = @transform_12, window_bounds = array<i64: 1, 512, 128>}, {transform_indices = @transform_13, window_bounds = array<i64: 1, 1, 128>}, {transform_indices = @transform_14, window_bounds = array<i64: 1, 1, 128>}, {transform_indices = @transform_15, window_bounds = array<i64: 1, 1, 128>}, {pipeline_mode = #tpu.pipeline_mode<synchronous>, transform_indices = @transform_16, window_bounds = array<i64: 128, 128>}, {pipeline_mode = #tpu.pipeline_mode<synchronous>, transform_indices = @transform_17, window_bounds = array<i64: 1, 128>}, {pipeline_mode = #tpu.pipeline_mode<synchronous>, transform_indices = @transform_18, window_bounds = array<i64: 2, 128>}]} {
    %c0_i32 = arith.constant 0 : i32
    %0 = arith.cmpi eq, %arg0, %c0_i32 : i32
    %1 = arith.extui %0 : i1 to i32
    %c0_i32_0 = arith.constant 0 : i32
    %2 = arith.cmpi ne, %1, %c0_i32_0 : i32
    scf.if %2 {
      %c0_70 = arith.constant 0 : index
      %c0_71 = arith.constant 0 : index
      %149 = vector.load %arg1[%c0_70, %c0_71] : memref<16x128xf32, #tpu.memory_space<vmem>>, vector<16x128xf32>
      %c0_72 = arith.constant 0 : index
      %c0_73 = arith.constant 0 : index
      %150 = vector.load %arg2[%c0_72, %c0_73] : memref<1x128xf32, #tpu.memory_space<vmem>>, vector<1x128xf32>
      %c0_74 = arith.constant 0 : index
      %c0_75 = arith.constant 0 : index
      %151 = vector.load %arg3[%c0_74, %c0_75] : memref<1x128xf32, #tpu.memory_space<vmem>>, vector<1x128xf32>
      %cst_76 = arith.constant dense<0.000000e+00> : vector<16xf32>
      %152 = vector.multi_reduction <add>, %149, %cst_76 [1] : vector<16x128xf32> to vector<16xf32>
      %153 = vector.shape_cast %152 : vector<16xf32> to vector<16x1xf32>
      %cst_77 = arith.constant 1.280000e+02 : f32
      %154 = vector.broadcast %cst_77 : f32 to vector<16x1xf32>
      %155 = arith.divf %153, %154 : vector<16x1xf32>
      %156 = vector.broadcast %155 : vector<16x1xf32> to vector<16x128xf32>
      %157 = arith.subf %149, %156 : vector<16x128xf32>
      %158 = arith.mulf %157, %157 : vector<16x128xf32>
      %cst_78 = arith.constant dense<0.000000e+00> : vector<16xf32>
      %159 = vector.multi_reduction <add>, %158, %cst_78 [1] : vector<16x128xf32> to vector<16xf32>
      %160 = vector.shape_cast %159 : vector<16xf32> to vector<16x1xf32>
      %cst_79 = arith.constant 1.280000e+02 : f32
      %161 = vector.broadcast %cst_79 : f32 to vector<16x1xf32>
      %162 = arith.divf %160, %161 : vector<16x1xf32>
      %cst_80 = arith.constant 9.99999974E-6 : f32
      %163 = vector.broadcast %cst_80 : f32 to vector<16x1xf32>
      %164 = arith.addf %162, %163 : vector<16x1xf32>
      %165 = math.rsqrt %164 : vector<16x1xf32>
      %166 = vector.broadcast %165 : vector<16x1xf32> to vector<16x128xf32>
      %167 = arith.mulf %157, %166 : vector<16x128xf32>
      %168 = vector.broadcast %150 : vector<1x128xf32> to vector<16x128xf32>
      %169 = arith.mulf %167, %168 : vector<16x128xf32>
      %170 = vector.broadcast %151 : vector<1x128xf32> to vector<16x128xf32>
      %171 = arith.addf %169, %170 : vector<16x128xf32>
      %c0_81 = arith.constant 0 : index
      %c0_82 = arith.constant 0 : index
      %172 = vector.load %arg20[%c0_81, %c0_82] : memref<16x128xf32, #tpu.memory_space<vmem>>, vector<16x128xf32>
      tpu.vector_store %arg20[%c0_81, %c0_82], %171 {strides = array<i32>} : memref<16x128xf32, #tpu.memory_space<vmem>>, vector<16x128xf32>,
    } else {
    }
    %c0 = arith.constant 0 : index
    %c0_1 = arith.constant 0 : index
    %3 = vector.load %arg20[%c0, %c0_1] : memref<16x128xf32, #tpu.memory_space<vmem>>, vector<16x128xf32>
    %c0_2 = arith.constant 0 : index
    %c0_3 = arith.constant 0 : index
    %c0_4 = arith.constant 0 : index
    %4 = vector.load %arg5[%c0_2, %c0_3, %c0_4] : memref<1x128x384xbf16, #tpu.memory_space<vmem>>, vector<1x128x384xbf16>
    %5 = vector.shape_cast %4 : vector<1x128x384xbf16> to vector<128x384xbf16>
    %c0_5 = arith.constant 0 : index
    %c0_6 = arith.constant 0 : index
    %c0_7 = arith.constant 0 : index
    %6 = vector.load %arg6[%c0_5, %c0_6, %c0_7] : memref<1x1x384xf32, #tpu.memory_space<vmem>>, vector<1x1x384xf32>
    %7 = vector.shape_cast %6 : vector<1x1x384xf32> to vector<1x384xf32>
    %8 = arith.truncf %3 : vector<16x128xf32> to vector<16x128xbf16>
    %cst = arith.constant dense<0.000000e+00> : vector<16x384xf32>
    %9 = tpu.matmul %8, %5, %cst {dimension_numbers = #tpu.dot_dimension_numbers<[1], [0], [0], [1], [0, 0, 1, 1], [], []>} : vector<16x128xbf16>, vector<128x384xbf16>, vector<16x384xf32> -> vector<16x384xf32>
    %10 = vector.broadcast %7 : vector<1x384xf32> to vector<16x384xf32>
    %11 = arith.addf %9, %10 : vector<16x384xf32>
    %c0_8 = arith.constant 0 : index
    %c0_9 = arith.constant 0 : index
    %12 = vector.load %arg4[%c0_8, %c0_9] : memref<16x16xf32, #tpu.memory_space<vmem>>, vector<16x16xf32>
    %13 = vector.extract_strided_slice %11 {offsets = [0, 0], sizes = [16, 64], strides = [1, 1]} : vector<16x384xf32> to vector<16x64xf32>
    %14 = vector.extract_strided_slice %11 {offsets = [0, 128], sizes = [16, 64], strides = [1, 1]} : vector<16x384xf32> to vector<16x64xf32>
    %15 = vector.extract_strided_slice %11 {offsets = [0, 256], sizes = [16, 64], strides = [1, 1]} : vector<16x384xf32> to vector<16x64xf32>
    %16 = arith.truncf %13 : vector<16x64xf32> to vector<16x64xbf16>
    %17 = arith.truncf %14 : vector<16x64xf32> to vector<16x64xbf16>
    %cst_10 = arith.constant dense<0.000000e+00> : vector<16x16xf32>
    %18 = tpu.matmul %16, %17, %cst_10 {dimension_numbers = #tpu.dot_dimension_numbers<[1], [1], [0], [0], [0, 0, 1, 0], [], []>} : vector<16x64xbf16>, vector<16x64xbf16>, vector<16x16xf32> -> vector<16x16xf32>
    %cst_11 = arith.constant 1.250000e-01 : f32
    %19 = vector.broadcast %cst_11 : f32 to vector<16x16xf32>
    %20 = arith.mulf %18, %19 : vector<16x16xf32>
    %21 = arith.addf %20, %12 : vector<16x16xf32>
    %cst_12 = arith.constant dense<0xFF800000> : vector<16xf32>
    %22 = vector.multi_reduction <maximumf>, %21, %cst_12 [1] : vector<16x16xf32> to vector<16xf32>
    %23 = vector.shape_cast %22 : vector<16xf32> to vector<16x1xf32>
    %24 = vector.broadcast %23 : vector<16x1xf32> to vector<16x16xf32>
    %25 = arith.subf %21, %24 : vector<16x16xf32>
    %26 = math.exp %25 : vector<16x16xf32>
    %cst_13 = arith.constant dense<0.000000e+00> : vector<16xf32>
    %27 = vector.multi_reduction <add>, %26, %cst_13 [1] : vector<16x16xf32> to vector<16xf32>
    %28 = vector.shape_cast %27 : vector<16xf32> to vector<16x1xf32>
    %29 = tpu.reciprocal %28 {approx = true} : vector<16x1xf32> -> vector<16x1xf32>
    %30 = vector.broadcast %29 : vector<16x1xf32> to vector<16x16xf32>
    %31 = arith.mulf %26, %30 : vector<16x16xf32>
    %32 = arith.truncf %31 : vector<16x16xf32> to vector<16x16xbf16>
    %33 = arith.truncf %15 : vector<16x64xf32> to vector<16x64xbf16>
    %cst_14 = arith.constant dense<0.000000e+00> : vector<16x64xf32>
    %34 = tpu.matmul %32, %33, %cst_14 {dimension_numbers = #tpu.dot_dimension_numbers<[1], [0], [0], [1], [0, 0, 1, 1], [], []>} : vector<16x16xbf16>, vector<16x64xbf16>, vector<16x64xf32> -> vector<16x64xf32>
    %35 = vector.extract_strided_slice %11 {offsets = [0, 64], sizes = [16, 64], strides = [1, 1]} : vector<16x384xf32> to vector<16x64xf32>
    %36 = vector.extract_strided_slice %11 {offsets = [0, 192], sizes = [16, 64], strides = [1, 1]} : vector<16x384xf32> to vector<16x64xf32>
    %37 = vector.extract_strided_slice %11 {offsets = [0, 320], sizes = [16, 64], strides = [1, 1]} : vector<16x384xf32> to vector<16x64xf32>
    %38 = arith.truncf %35 : vector<16x64xf32> to vector<16x64xbf16>
    %39 = arith.truncf %36 : vector<16x64xf32> to vector<16x64xbf16>
    %cst_15 = arith.constant dense<0.000000e+00> : vector<16x16xf32>
    %40 = tpu.matmul %38, %39, %cst_15 {dimension_numbers = #tpu.dot_dimension_numbers<[1], [1], [0], [0], [0, 0, 1, 0], [], []>} : vector<16x64xbf16>, vector<16x64xbf16>, vector<16x16xf32> -> vector<16x16xf32>
    %cst_16 = arith.constant 1.250000e-01 : f32
    %41 = vector.broadcast %cst_16 : f32 to vector<16x16xf32>
    %42 = arith.mulf %40, %41 : vector<16x16xf32>
    %43 = arith.addf %42, %12 : vector<16x16xf32>
    %cst_17 = arith.constant dense<0xFF800000> : vector<16xf32>
    %44 = vector.multi_reduction <maximumf>, %43, %cst_17 [1] : vector<16x16xf32> to vector<16xf32>
    %45 = vector.shape_cast %44 : vector<16xf32> to vector<16x1xf32>
    %46 = vector.broadcast %45 : vector<16x1xf32> to vector<16x16xf32>
    %47 = arith.subf %43, %46 : vector<16x16xf32>
    %48 = math.exp %47 : vector<16x16xf32>
    %cst_18 = arith.constant dense<0.000000e+00> : vector<16xf32>
    %49 = vector.multi_reduction <add>, %48, %cst_18 [1] : vector<16x16xf32> to vector<16xf32>
    %50 = vector.shape_cast %49 : vector<16xf32> to vector<16x1xf32>
    %51 = tpu.reciprocal %50 {approx = true} : vector<16x1xf32> -> vector<16x1xf32>
    %52 = vector.broadcast %51 : vector<16x1xf32> to vector<16x16xf32>
    %53 = arith.mulf %48, %52 : vector<16x16xf32>
    %54 = arith.truncf %53 : vector<16x16xf32> to vector<16x16xbf16>
    %55 = arith.truncf %37 : vector<16x64xf32> to vector<16x64xbf16>
    %cst_19 = arith.constant dense<0.000000e+00> : vector<16x64xf32>
    %56 = tpu.matmul %54, %55, %cst_19 {dimension_numbers = #tpu.dot_dimension_numbers<[1], [0], [0], [1], [0, 0, 1, 1], [], []>} : vector<16x16xbf16>, vector<16x64xbf16>, vector<16x64xf32> -> vector<16x64xf32>
    %57 = tpu.concatenate %34, %56 in 1 : vector<16x64xf32>, vector<16x64xf32> -> vector<16x128xf32>
    %c0_20 = arith.constant 0 : index
    %c0_21 = arith.constant 0 : index
    %c0_22 = arith.constant 0 : index
    %58 = vector.load %arg7[%c0_20, %c0_21, %c0_22] : memref<1x128x128xbf16, #tpu.memory_space<vmem>>, vector<1x128x128xbf16>
    %59 = vector.shape_cast %58 : vector<1x128x128xbf16> to vector<128x128xbf16>
    %c0_23 = arith.constant 0 : index
    %c0_24 = arith.constant 0 : index
    %c0_25 = arith.constant 0 : index
    %60 = vector.load %arg8[%c0_23, %c0_24, %c0_25] : memref<1x1x128xf32, #tpu.memory_space<vmem>>, vector<1x1x128xf32>
    %61 = vector.shape_cast %60 : vector<1x1x128xf32> to vector<1x128xf32>
    %62 = arith.truncf %57 : vector<16x128xf32> to vector<16x128xbf16>
    %cst_26 = arith.constant dense<0.000000e+00> : vector<16x128xf32>
    %63 = tpu.matmul %62, %59, %cst_26 {dimension_numbers = #tpu.dot_dimension_numbers<[1], [0], [0], [1], [0, 0, 1, 1], [], []>} : vector<16x128xbf16>, vector<128x128xbf16>, vector<16x128xf32> -> vector<16x128xf32>
    %64 = vector.broadcast %61 : vector<1x128xf32> to vector<16x128xf32>
    %65 = arith.addf %63, %64 : vector<16x128xf32>
    %66 = arith.addf %3, %65 : vector<16x128xf32>
    %c0_27 = arith.constant 0 : index
    %c0_28 = arith.constant 0 : index
    %c0_29 = arith.constant 0 : index
    %67 = vector.load %arg9[%c0_27, %c0_28, %c0_29] : memref<1x1x128xf32, #tpu.memory_space<vmem>>, vector<1x1x128xf32>
    %68 = vector.shape_cast %67 : vector<1x1x128xf32> to vector<1x128xf32>
    %c0_30 = arith.constant 0 : index
    %c0_31 = arith.constant 0 : index
    %c0_32 = arith.constant 0 : index
    %69 = vector.load %arg10[%c0_30, %c0_31, %c0_32] : memref<1x1x128xf32, #tpu.memory_space<vmem>>, vector<1x1x128xf32>
    %70 = vector.shape_cast %69 : vector<1x1x128xf32> to vector<1x128xf32>
    %cst_33 = arith.constant dense<0.000000e+00> : vector<16xf32>
    %71 = vector.multi_reduction <add>, %66, %cst_33 [1] : vector<16x128xf32> to vector<16xf32>
    %72 = vector.shape_cast %71 : vector<16xf32> to vector<16x1xf32>
    %cst_34 = arith.constant 1.280000e+02 : f32
    %73 = vector.broadcast %cst_34 : f32 to vector<16x1xf32>
    %74 = arith.divf %72, %73 : vector<16x1xf32>
    %75 = vector.broadcast %74 : vector<16x1xf32> to vector<16x128xf32>
    %76 = arith.subf %66, %75 : vector<16x128xf32>
    %77 = arith.mulf %76, %76 : vector<16x128xf32>
    %cst_35 = arith.constant dense<0.000000e+00> : vector<16xf32>
    %78 = vector.multi_reduction <add>, %77, %cst_35 [1] : vector<16x128xf32> to vector<16xf32>
    %79 = vector.shape_cast %78 : vector<16xf32> to vector<16x1xf32>
    %cst_36 = arith.constant 1.280000e+02 : f32
    %80 = vector.broadcast %cst_36 : f32 to vector<16x1xf32>
    %81 = arith.divf %79, %80 : vector<16x1xf32>
    %cst_37 = arith.constant 9.99999974E-6 : f32
    %82 = vector.broadcast %cst_37 : f32 to vector<16x1xf32>
    %83 = arith.addf %81, %82 : vector<16x1xf32>
    %84 = math.rsqrt %83 : vector<16x1xf32>
    %85 = vector.broadcast %84 : vector<16x1xf32> to vector<16x128xf32>
    %86 = arith.mulf %76, %85 : vector<16x128xf32>
    %87 = vector.broadcast %68 : vector<1x128xf32> to vector<16x128xf32>
    %88 = arith.mulf %86, %87 : vector<16x128xf32>
    %89 = vector.broadcast %70 : vector<1x128xf32> to vector<16x128xf32>
    %90 = arith.addf %88, %89 : vector<16x128xf32>
    %c0_38 = arith.constant 0 : index
    %c0_39 = arith.constant 0 : index
    %c0_40 = arith.constant 0 : index
    %91 = vector.load %arg11[%c0_38, %c0_39, %c0_40] : memref<1x128x512xbf16, #tpu.memory_space<vmem>>, vector<1x128x512xbf16>
    %92 = vector.shape_cast %91 : vector<1x128x512xbf16> to vector<128x512xbf16>
    %c0_41 = arith.constant 0 : index
    %c0_42 = arith.constant 0 : index
    %c0_43 = arith.constant 0 : index
    %93 = vector.load %arg12[%c0_41, %c0_42, %c0_43] : memref<1x1x512xf32, #tpu.memory_space<vmem>>, vector<1x1x512xf32>
    %94 = vector.shape_cast %93 : vector<1x1x512xf32> to vector<1x512xf32>
    %95 = arith.truncf %90 : vector<16x128xf32> to vector<16x128xbf16>
    %cst_44 = arith.constant dense<0.000000e+00> : vector<16x512xf32>
    %96 = tpu.matmul %95, %92, %cst_44 {dimension_numbers = #tpu.dot_dimension_numbers<[1], [0], [0], [1], [0, 0, 1, 1], [], []>} : vector<16x128xbf16>, vector<128x512xbf16>, vector<16x512xf32> -> vector<16x512xf32>
    %97 = vector.broadcast %94 : vector<1x512xf32> to vector<16x512xf32>
    %98 = arith.addf %96, %97 : vector<16x512xf32>
    %99 = arith.mulf %98, %98 : vector<16x512xf32>
    %100 = arith.mulf %98, %99 : vector<16x512xf32>
    %cst_45 = arith.constant 4.471500e-02 : f32
    %101 = vector.broadcast %cst_45 : f32 to vector<16x512xf32>
    %102 = arith.mulf %101, %100 : vector<16x512xf32>
    %103 = arith.addf %98, %102 : vector<16x512xf32>
    %cst_46 = arith.constant 0.797884583 : f32
    %104 = vector.broadcast %cst_46 : f32 to vector<16x512xf32>
    %105 = arith.mulf %104, %103 : vector<16x512xf32>
    %106 = math.tanh %105 : vector<16x512xf32>
    %cst_47 = arith.constant 1.000000e+00 : f32
    %107 = vector.broadcast %cst_47 : f32 to vector<16x512xf32>
    %108 = arith.addf %107, %106 : vector<16x512xf32>
    %cst_48 = arith.constant 5.000000e-01 : f32
    %109 = vector.broadcast %cst_48 : f32 to vector<16x512xf32>
    %110 = arith.mulf %109, %108 : vector<16x512xf32>
    %111 = arith.mulf %98, %110 : vector<16x512xf32>
    %c0_49 = arith.constant 0 : index
    %c0_50 = arith.constant 0 : index
    %c0_51 = arith.constant 0 : index
    %112 = vector.load %arg13[%c0_49, %c0_50, %c0_51] : memref<1x512x128xbf16, #tpu.memory_space<vmem>>, vector<1x512x128xbf16>
    %113 = vector.shape_cast %112 : vector<1x512x128xbf16> to vector<512x128xbf16>
    %c0_52 = arith.constant 0 : index
    %c0_53 = arith.constant 0 : index
    %c0_54 = arith.constant 0 : index
    %114 = vector.load %arg14[%c0_52, %c0_53, %c0_54] : memref<1x1x128xf32, #tpu.memory_space<vmem>>, vector<1x1x128xf32>
    %115 = vector.shape_cast %114 : vector<1x1x128xf32> to vector<1x128xf32>
    %116 = arith.truncf %111 : vector<16x512xf32> to vector<16x512xbf16>
    %cst_55 = arith.constant dense<0.000000e+00> : vector<16x128xf32>
    %117 = tpu.matmul %116, %113, %cst_55 {dimension_numbers = #tpu.dot_dimension_numbers<[1], [0], [0], [1], [0, 0, 1, 1], [], []>} : vector<16x512xbf16>, vector<512x128xbf16>, vector<16x128xf32> -> vector<16x128xf32>
    %118 = vector.broadcast %115 : vector<1x128xf32> to vector<16x128xf32>
    %119 = arith.addf %117, %118 : vector<16x128xf32>
    %120 = arith.addf %90, %119 : vector<16x128xf32>
    %c0_56 = arith.constant 0 : index
    %c0_57 = arith.constant 0 : index
    %c0_58 = arith.constant 0 : index
    %121 = vector.load %arg15[%c0_56, %c0_57, %c0_58] : memref<1x1x128xf32, #tpu.memory_space<vmem>>, vector<1x1x128xf32>
    %122 = vector.shape_cast %121 : vector<1x1x128xf32> to vector<1x128xf32>
    %c0_59 = arith.constant 0 : index
    %c0_60 = arith.constant 0 : index
    %c0_61 = arith.constant 0 : index
    %123 = vector.load %arg16[%c0_59, %c0_60, %c0_61] : memref<1x1x128xf32, #tpu.memory_space<vmem>>, vector<1x1x128xf32>
    %124 = vector.shape_cast %123 : vector<1x1x128xf32> to vector<1x128xf32>
    %cst_62 = arith.constant dense<0.000000e+00> : vector<16xf32>
    %125 = vector.multi_reduction <add>, %120, %cst_62 [1] : vector<16x128xf32> to vector<16xf32>
    %126 = vector.shape_cast %125 : vector<16xf32> to vector<16x1xf32>
    %cst_63 = arith.constant 1.280000e+02 : f32
    %127 = vector.broadcast %cst_63 : f32 to vector<16x1xf32>
    %128 = arith.divf %126, %127 : vector<16x1xf32>
    %129 = vector.broadcast %128 : vector<16x1xf32> to vector<16x128xf32>
    %130 = arith.subf %120, %129 : vector<16x128xf32>
    %131 = arith.mulf %130, %130 : vector<16x128xf32>
    %cst_64 = arith.constant dense<0.000000e+00> : vector<16xf32>
    %132 = vector.multi_reduction <add>, %131, %cst_64 [1] : vector<16x128xf32> to vector<16xf32>
    %133 = vector.shape_cast %132 : vector<16xf32> to vector<16x1xf32>
    %cst_65 = arith.constant 1.280000e+02 : f32
    %134 = vector.broadcast %cst_65 : f32 to vector<16x1xf32>
    %135 = arith.divf %133, %134 : vector<16x1xf32>
    %cst_66 = arith.constant 9.99999974E-6 : f32
    %136 = vector.broadcast %cst_66 : f32 to vector<16x1xf32>
    %137 = arith.addf %135, %136 : vector<16x1xf32>
    %138 = math.rsqrt %137 : vector<16x1xf32>
    %139 = vector.broadcast %138 : vector<16x1xf32> to vector<16x128xf32>
    %140 = arith.mulf %130, %139 : vector<16x128xf32>
    %141 = vector.broadcast %122 : vector<1x128xf32> to vector<16x128xf32>
    %142 = arith.mulf %140, %141 : vector<16x128xf32>
    %143 = vector.broadcast %124 : vector<1x128xf32> to vector<16x128xf32>
    %144 = arith.addf %142, %143 : vector<16x128xf32>
    %c0_67 = arith.constant 0 : index
    %c0_68 = arith.constant 0 : index
    %145 = vector.load %arg20[%c0_67, %c0_68] : memref<16x128xf32, #tpu.memory_space<vmem>>, vector<16x128xf32>
    tpu.vector_store %arg20[%c0_67, %c0_68], %144 {strides = array<i32>} : memref<16x128xf32, #tpu.memory_space<vmem>>, vector<16x128xf32>,
    %c1_i32 = arith.constant 1 : i32
    %146 = arith.cmpi eq, %arg0, %c1_i32 : i32
    %147 = arith.extui %146 : i1 to i32
    %c0_i32_69 = arith.constant 0 : i32
    %148 = arith.cmpi ne, %147, %c0_i32_69 : i32
    scf.if %148 {
      %149 = vector.extract_strided_slice %144 {offsets = [0, 0], sizes = [1, 128], strides = [1, 1]} : vector<16x128xf32> to vector<1x128xf32>
      %150 = vector.extract_strided_slice %144 {offsets = [8, 0], sizes = [1, 128], strides = [1, 1]} : vector<16x128xf32> to vector<1x128xf32>
      %151 = tpu.concatenate %149, %150 in 0 : vector<1x128xf32>, vector<1x128xf32> -> vector<2x128xf32>
      %c0_70 = arith.constant 0 : index
      %c0_71 = arith.constant 0 : index
      %152 = vector.load %arg17[%c0_70, %c0_71] : memref<128x128xbf16, #tpu.memory_space<vmem>>, vector<128x128xbf16>
      %c0_72 = arith.constant 0 : index
      %c0_73 = arith.constant 0 : index
      %153 = vector.load %arg18[%c0_72, %c0_73] : memref<1x128xf32, #tpu.memory_space<vmem>>, vector<1x128xf32>
      %154 = arith.truncf %151 : vector<2x128xf32> to vector<2x128xbf16>
      %cst_74 = arith.constant dense<0.000000e+00> : vector<2x128xf32>
      %155 = tpu.matmul %154, %152, %cst_74 {dimension_numbers = #tpu.dot_dimension_numbers<[1], [0], [0], [1], [0, 0, 1, 1], [], []>} : vector<2x128xbf16>, vector<128x128xbf16>, vector<2x128xf32> -> vector<2x128xf32>
      %156 = vector.broadcast %153 : vector<1x128xf32> to vector<2x128xf32>
      %157 = arith.addf %155, %156 : vector<2x128xf32>
      %c0_75 = arith.constant 0 : index
      %c0_76 = arith.constant 0 : index
      %158 = vector.load %arg19[%c0_75, %c0_76] : memref<2x128xf32, #tpu.memory_space<vmem>>, vector<2x128xf32>
      tpu.vector_store %arg19[%c0_75, %c0_76], %157 {strides = array<i32>} : memref<2x128xf32, #tpu.memory_space<vmem>>, vector<2x128xf32>,
    } else {
    }
    return
  }
  func.func @transform_0(%arg0: i32) -> (i32, i32) {
    %c0_i32 = arith.constant 0 : i32
    %c0_i32_0 = arith.constant 0 : i32
    %c0_i32_1 = arith.constant 0 : i32
    return %c0_i32, %c0_i32_0 : i32, i32
  }
  func.func @transform_1(%arg0: i32) -> (i32, i32) {
    %c0_i32 = arith.constant 0 : i32
    %c0_i32_0 = arith.constant 0 : i32
    %c0_i32_1 = arith.constant 0 : i32
    return %c0_i32, %c0_i32_0 : i32, i32
  }
  func.func @transform_2(%arg0: i32) -> (i32, i32) {
    %c0_i32 = arith.constant 0 : i32
    %c0_i32_0 = arith.constant 0 : i32
    %c0_i32_1 = arith.constant 0 : i32
    return %c0_i32, %c0_i32_0 : i32, i32
  }
  func.func @transform_3(%arg0: i32) -> (i32, i32) {
    %c0_i32 = arith.constant 0 : i32
    %c0_i32_0 = arith.constant 0 : i32
    %c0_i32_1 = arith.constant 0 : i32
    return %c0_i32, %c0_i32_0 : i32, i32
  }
  func.func @transform_4(%arg0: i32) -> (i32, i32, i32) {
    %c0_i32 = arith.constant 0 : i32
    %c0_i32_0 = arith.constant 0 : i32
    %c0_i32_1 = arith.constant 0 : i32
    return %arg0, %c0_i32, %c0_i32_0 : i32, i32, i32
  }
  func.func @transform_5(%arg0: i32) -> (i32, i32, i32) {
    %c0_i32 = arith.constant 0 : i32
    %c0_i32_0 = arith.constant 0 : i32
    %c0_i32_1 = arith.constant 0 : i32
    return %arg0, %c0_i32, %c0_i32_0 : i32, i32, i32
  }
  func.func @transform_6(%arg0: i32) -> (i32, i32, i32) {
    %c0_i32 = arith.constant 0 : i32
    %c0_i32_0 = arith.constant 0 : i32
    %c0_i32_1 = arith.constant 0 : i32
    return %arg0, %c0_i32, %c0_i32_0 : i32, i32, i32
  }
  func.func @transform_7(%arg0: i32) -> (i32, i32, i32) {
    %c0_i32 = arith.constant 0 : i32
    %c0_i32_0 = arith.constant 0 : i32
    %c0_i32_1 = arith.constant 0 : i32
    return %arg0, %c0_i32, %c0_i32_0 : i32, i32, i32
  }
  func.func @transform_8(%arg0: i32) -> (i32, i32, i32) {
    %c0_i32 = arith.constant 0 : i32
    %c0_i32_0 = arith.constant 0 : i32
    %c0_i32_1 = arith.constant 0 : i32
    return %arg0, %c0_i32, %c0_i32_0 : i32, i32, i32
  }
  func.func @transform_9(%arg0: i32) -> (i32, i32, i32) {
    %c0_i32 = arith.constant 0 : i32
    %c0_i32_0 = arith.constant 0 : i32
    %c0_i32_1 = arith.constant 0 : i32
    return %arg0, %c0_i32, %c0_i32_0 : i32, i32, i32
  }
  func.func @transform_10(%arg0: i32) -> (i32, i32, i32) {
    %c0_i32 = arith.constant 0 : i32
    %c0_i32_0 = arith.constant 0 : i32
    %c0_i32_1 = arith.constant 0 : i32
    return %arg0, %c0_i32, %c0_i32_0 : i32, i32, i32
  }
  func.func @transform_11(%arg0: i32) -> (i32, i32, i32) {
    %c0_i32 = arith.constant 0 : i32
    %c0_i32_0 = arith.constant 0 : i32
    %c0_i32_1 = arith.constant 0 : i32
    return %arg0, %c0_i32, %c0_i32_0 : i32, i32, i32
  }
  func.func @transform_12(%arg0: i32) -> (i32, i32, i32) {
    %c0_i32 = arith.constant 0 : i32
    %c0_i32_0 = arith.constant 0 : i32
    %c0_i32_1 = arith.constant 0 : i32
    return %arg0, %c0_i32, %c0_i32_0 : i32, i32, i32
  }
  func.func @transform_13(%arg0: i32) -> (i32, i32, i32) {
    %c0_i32 = arith.constant 0 : i32
    %c0_i32_0 = arith.constant 0 : i32
    %c0_i32_1 = arith.constant 0 : i32
    return %arg0, %c0_i32, %c0_i32_0 : i32, i32, i32
  }
  func.func @transform_14(%arg0: i32) -> (i32, i32, i32) {
    %c0_i32 = arith.constant 0 : i32
    %c0_i32_0 = arith.constant 0 : i32
    %c0_i32_1 = arith.constant 0 : i32
    return %arg0, %c0_i32, %c0_i32_0 : i32, i32, i32
  }
  func.func @transform_15(%arg0: i32) -> (i32, i32, i32) {
    %c0_i32 = arith.constant 0 : i32
    %c0_i32_0 = arith.constant 0 : i32
    %c0_i32_1 = arith.constant 0 : i32
    return %arg0, %c0_i32, %c0_i32_0 : i32, i32, i32
  }
  func.func @transform_16(%arg0: i32) -> (i32, i32) {
    %c0_i32 = arith.constant 0 : i32
    %c0_i32_0 = arith.constant 0 : i32
    %c0_i32_1 = arith.constant 0 : i32
    return %c0_i32, %c0_i32_0 : i32, i32
  }
  func.func @transform_17(%arg0: i32) -> (i32, i32) {
    %c0_i32 = arith.constant 0 : i32
    %c0_i32_0 = arith.constant 0 : i32
    %c0_i32_1 = arith.constant 0 : i32
    return %c0_i32, %c0_i32_0 : i32, i32
  }
  func.func @transform_18(%arg0: i32) -> (i32, i32) {
    %c0_i32 = arith.constant 0 : i32
    %c0_i32_0 = arith.constant 0 : i32
    %c0_i32_1 = arith.constant 0 : i32
    return %c0_i32, %c0_i32_0 : i32, i32
  }
}

</mosaic_0001>

<llo_original>
// kernel: codebert_classifier_forward.1
$region0: #{codebert_classifier_forward.1}
  #allocation0 [shape = 'u32[]', space=smem, size = 0x4, offset = 0x4, fixed_abs, tag = 'smem constant byte address 0x4 - core index']
  #allocation1 [shape = 'u32[144,128]{1,0:T(1,128)}', space=vmem, size = 0x12000, scoped, tag = 'internal scratch']
  #allocation2 [shape = 'f32[16,128]{1,0:T(8,128)}', space=vmem, size = 0x2000, scoped, tag = 'scratch operand']
  %s0 = inlined_call_operand.vmem [shape: f32[16,128], index: 0, kind: input, shape index: {}]
  %s1 = inlined_call_operand.hbm [shape: f32[1,128], index: 1, kind: input, shape index: {}]
  %s2 = inlined_call_operand.hbm [shape: f32[1,128], index: 2, kind: input, shape index: {}]
  %s3 = inlined_call_operand.vmem [shape: f32[16,16], index: 3, kind: input, shape index: {}]
  %s4 = inlined_call_operand.vmem [shape: bf16[2,128,384], index: 4, kind: input, shape index: {}]
  %s5 = inlined_call_operand.vmem [shape: f32[2,1,384], index: 5, kind: input, shape index: {}]
  %s6 = inlined_call_operand.hbm [shape: bf16[2,128,128], index: 6, kind: input, shape index: {}]
  %s7 = inlined_call_operand.vmem [shape: f32[2,1,128], index: 7, kind: input, shape index: {}]
  %s8 = inlined_call_operand.hbm [shape: f32[2,1,128], index: 8, kind: input, shape index: {}]
  %s9 = inlined_call_operand.hbm [shape: f32[2,1,128], index: 9, kind: input, shape index: {}]
  %s10 = inlined_call_operand.hbm [shape: bf16[2,128,512], index: 10, kind: input, shape index: {}]
  %s11 = inlined_call_operand.vmem [shape: f32[2,1,512], index: 11, kind: input, shape index: {}]
  %s12 = inlined_call_operand.hbm [shape: bf16[2,512,128], index: 12, kind: input, shape index: {}]
  %s13 = inlined_call_operand.vmem [shape: f32[2,1,128], index: 13, kind: input, shape index: {}]
  %s14 = inlined_call_operand.hbm [shape: f32[2,1,128], index: 14, kind: input, shape index: {}]
  %s15 = inlined_call_operand.hbm [shape: f32[2,1,128], index: 15, kind: input, shape index: {}]
  %s16 = inlined_call_operand.hbm [shape: bf16[128,128], index: 16, kind: input, shape index: {}]
  %s17 = inlined_call_operand.hbm [shape: f32[1,128], index: 17, kind: input, shape index: {}]
  %s18 = inlined_call_operand.hbm [shape: f32[2,128], index: 18, kind: output, shape index: {}]
  %s19 = sld [smem:[#allocation0]]
  $region157: #{codebert_classifier_forward.1} parent=0
    _
  %s21 = ssub.s32 1, %s19
  %s22 = scalar_select 0, %s21, %s19
  $region1: #{codebert_classifier_forward.1} parent=0
    #allocation3 [shape = 'u8[512]{0}', space=vmem, size = 0x400, scoped, tag = 'input window, operand 1, single buffered']
    #allocation4 [shape = 's32[2]{0}', space=sflag, size = 0x8, scoped, tag = 'scoped memory for codebert_classifier_forward.1']
    #allocation5 [shape = 's32[2]{0}', space=sflag, size = 0x8, scoped, tag = 'scoped memory for codebert_classifier_forward.1']
    #allocation6 [shape = 'u8[512]{0}', space=vmem, size = 0x400, scoped, tag = 'input window, operand 2, single buffered']
    #allocation7 [shape = 's32[1]{0}', space=sflag, size = 0x4, scoped, tag = 'scoped memory for codebert_classifier_forward.1']
    #allocation8 [shape = 'u8[65536]{0}', space=vmem, size = 0x10000, scoped, tag = 'input window, operand 6']
    #allocation9 [shape = 'u8[1024]{0}', space=vmem, size = 0x400, scoped, tag = 'input window, operand 8']
    #allocation10 [shape = 'u8[1024]{0}', space=vmem, size = 0x400, scoped, tag = 'input window, operand 9']
    #allocation11 [shape = 'u8[262144]{0}', space=vmem, size = 0x40000, scoped, tag = 'input window, operand 10']
    #allocation12 [shape = 'u8[262144]{0}', space=vmem, size = 0x40000, scoped, tag = 'input window, operand 12']
    #allocation13 [shape = 'u8[1024]{0}', space=vmem, size = 0x400, scoped, tag = 'input window, operand 14']
    #allocation14 [shape = 'u8[1024]{0}', space=vmem, size = 0x400, scoped, tag = 'input window, operand 15']
    #allocation15 [shape = 'u8[32768]{0}', space=vmem, size = 0x8000, scoped, tag = 'input window, operand 16, single buffered']
    #allocation16 [shape = 'u8[512]{0}', space=vmem, size = 0x400, scoped, tag = 'input window, operand 17, single buffered']
    #allocation17 [shape = 's32[1]{0}', space=sflag, size = 0x4, scoped, tag = 'scoped memory for codebert_classifier_forward.1']
    #allocation18 [shape = 'u8[1024]{0}', space=vmem, size = 0x400, scoped, tag = 'output window, operand 0, single buffered']
    %23 = vsyncpa [#allocation4], 0
    %24 = vsyncpa [#allocation7], 0
    %25 = vsyncpa [#allocation17], 0
    %26 = vsyncpa [#allocation5], 0
    loop: start=0, step=1, limit=4
    $region2: #{codebert_classifier_forward.1} parent=1 // loop_pre_header
      _
    $region3: #{codebert_classifier_forward.1} parent=1 // loop_header
      %s28 = sphi 0, %s32
      %p29 = scmp.ge.s32.totalorder %s28, 4
      %s36 = sphi 0, %s36
      %s38 = sphi 0, %s36
      %s39 = sphi 0, %s38
      %s53 = sphi 0, %s39
      %s57 = sphi 0, %s57
      %s59 = sphi 0, %s57
      %s60 = sphi 0, %s59
      %s74 = sphi 0, %s60
      %s78 = sphi 0, %s78
      %s80 = sphi 0, %s78
      %s81 = sphi 0, %s80
      %s95 = sphi 0, %s81
      %s99 = sphi 0, %s99
      %s101 = sphi 0, %s99
      %s102 = sphi 0, %s101
      %s116 = sphi 0, %s102
      %s122 = sphi 0, %s124
      %s125 = sphi 0, %s122
      %s126 = sphi 0, %s125
      %s142 = sphi 0, %s126
      %s148 = sphi 0, %s150
      %s151 = sphi 0, %s148
      %s152 = sphi 0, %s151
      %s168 = sphi 0, %s152
      %s174 = sphi 0, %s176
      %s177 = sphi 0, %s174
      %s178 = sphi 0, %s177
      %s194 = sphi 0, %s178
      %s200 = sphi 0, %s202
      %s203 = sphi 0, %s200
      %s204 = sphi 0, %s203
      %s220 = sphi 0, %s204
      %s226 = sphi 0, %s228
      %s229 = sphi 0, %s226
      %s230 = sphi 0, %s229
      %s246 = sphi 0, %s230
      %s252 = sphi 0, %s254
      %s255 = sphi 0, %s252
      %s256 = sphi 0, %s255
      %s272 = sphi 0, %s256
      %s278 = sphi 0, %s280
      %s281 = sphi 0, %s278
      %s282 = sphi 0, %s281
      %s298 = sphi 0, %s282
      %s304 = sphi 0, %s306
      %s307 = sphi 0, %s304
      %s308 = sphi 0, %s307
      %s324 = sphi 0, %s308
      %s330 = sphi 0, %s332
      %s333 = sphi 0, %s330
      %s334 = sphi 0, %s333
      %s350 = sphi 0, %s334
      %s356 = sphi 0, %s358
      %s359 = sphi 0, %s356
      %s360 = sphi 0, %s359
      %s376 = sphi 0, %s360
      %s382 = sphi 0, %s384
      %s385 = sphi 0, %s382
      %s386 = sphi 0, %s385
      %s402 = sphi 0, %s386
      %s408 = sphi 0, %s410
      %s411 = sphi 0, %s408
      %s412 = sphi 0, %s411
      %s428 = sphi 0, %s412
      %s432 = sphi 0, %s432
      %s434 = sphi 0, %s432
      %s435 = sphi 0, %s434
      %s449 = sphi 0, %s435
      %s453 = sphi 0, %s453
      %s455 = sphi 0, %s453
      %s456 = sphi 0, %s455
      %s470 = sphi 0, %s456
      %s474 = sphi 0, %s474
      %s476 = sphi 0, %s474
      %s477 = sphi 0, %s476
      %s491 = sphi 0, %s477
    $region4: #{codebert_classifier_forward.1} parent=1 // loop_header_branch
      %31 = sbr.rel (%p29) target = $region8
    $region5: #{codebert_classifier_forward.1} parent=1 // loop_body
      %s33 = ssub.s32 %s28, 1
      %s34 = ssub.s32 %s28, 2
      %s35 = sadd.s32 %s28, 1
      %s37 = sadd.s32 %s36, 1
      %p40 = scmp.eq.s32.totalorder %s28, 1
      %p41 = scmp.ne.s32.totalorder %s36, %s38
      %p42 = scmp.eq.s32.totalorder %s28, 0
      %p43 = por %p41, %p42
      %p44 = scmp.ne.s32.totalorder %s36, %s38
      %p45 = scmp.eq.s32.totalorder %s33, 1
      %p46 = por %p44, %p45
      %p47 = scmp.ne.s32.totalorder %s38, %s39
      %p48 = scmp.eq.s32.totalorder %s33, 0
      %p49 = por %p47, %p48
      %p50 = scmp.ne.s32.totalorder %s38, %s39
      %p51 = scmp.eq.s32.totalorder %s34, 1
      %p52 = por %p50, %p51
      %p54 = scmp.ne.s32.totalorder %s39, %s53
      %p55 = scmp.eq.s32.totalorder %s34, 0
      %p56 = por %p54, %p55
      %s58 = sadd.s32 %s57, 1
      %p61 = scmp.eq.s32.totalorder %s28, 1
      %p62 = scmp.ne.s32.totalorder %s57, %s59
      %p63 = scmp.eq.s32.totalorder %s28, 0
      %p64 = por %p62, %p63
      %p65 = scmp.ne.s32.totalorder %s57, %s59
      %p66 = scmp.eq.s32.totalorder %s33, 1
      %p67 = por %p65, %p66
      %p68 = scmp.ne.s32.totalorder %s59, %s60
      %p69 = scmp.eq.s32.totalorder %s33, 0
      %p70 = por %p68, %p69
      %p71 = scmp.ne.s32.totalorder %s59, %s60
      %p72 = scmp.eq.s32.totalorder %s34, 1
      %p73 = por %p71, %p72
      %p75 = scmp.ne.s32.totalorder %s60, %s74
      %p76 = scmp.eq.s32.totalorder %s34, 0
      %p77 = por %p75, %p76
      %s79 = sadd.s32 %s78, 1
      %p82 = scmp.eq.s32.totalorder %s28, 1
      %p83 = scmp.ne.s32.totalorder %s78, %s80
      %p84 = scmp.eq.s32.totalorder %s28, 0
      %p85 = por %p83, %p84
      %p86 = scmp.ne.s32.totalorder %s78, %s80
      %p87 = scmp.eq.s32.totalorder %s33, 1
      %p88 = por %p86, %p87
      %p89 = scmp.ne.s32.totalorder %s80, %s81
      %p90 = scmp.eq.s32.totalorder %s33, 0
      %p91 = por %p89, %p90
      %p92 = scmp.ne.s32.totalorder %s80, %s81
      %p93 = scmp.eq.s32.totalorder %s34, 1
      %p94 = por %p92, %p93
      %p96 = scmp.ne.s32.totalorder %s81, %s95
      %p97 = scmp.eq.s32.totalorder %s34, 0
      %p98 = por %p96, %p97
      %s100 = sadd.s32 %s99, 1
      %p103 = scmp.eq.s32.totalorder %s28, 1
      %p104 = scmp.ne.s32.totalorder %s99, %s101
      %p105 = scmp.eq.s32.totalorder %s28, 0
      %p106 = por %p104, %p105
      %p107 = scmp.ne.s32.totalorder %s99, %s101
      %p108 = scmp.eq.s32.totalorder %s33, 1
      %p109 = por %p107, %p108
      %p110 = scmp.ne.s32.totalorder %s101, %s102
      %p111 = scmp.eq.s32.totalorder %s33, 0
      %p112 = por %p110, %p111
      %p113 = scmp.ne.s32.totalorder %s101, %s102
      %p114 = scmp.eq.s32.totalorder %s34, 1
      %p115 = por %p113, %p114
      %p117 = scmp.ne.s32.totalorder %s102, %s116
      %p118 = scmp.eq.s32.totalorder %s34, 0
      %p119 = por %p117, %p118
      %s120 = ssub.s32 %s28, %s35
      %p121 = scmp.eq.s32.totalorder %s120, 0
      %s123 = sadd.s32 %s122, 1
      %s124 = scalar_select %p121, %s122, %s123
      %p127 = pneg %p121
      %p128 = scmp.eq.s32.totalorder %s28, 1
      %p129 = por %p127, %p128
      %p130 = scmp.ne.s32.totalorder %s122, %s125
      %p131 = scmp.eq.s32.totalorder %s28, 0
      %p132 = por %p130, %p131
      %p133 = scmp.ne.s32.totalorder %s122, %s125
      %p134 = scmp.eq.s32.totalorder %s33, 1
      %p135 = por %p133, %p134
      %p136 = scmp.ne.s32.totalorder %s125, %s126
      %p137 = scmp.eq.s32.totalorder %s33, 0
      %p138 = por %p136, %p137
      %p139 = scmp.ne.s32.totalorder %s125, %s126
      %p140 = scmp.eq.s32.totalorder %s34, 1
      %p141 = por %p139, %p140
      %p143 = scmp.ne.s32.totalorder %s126, %s142
      %p144 = scmp.eq.s32.totalorder %s34, 0
      %p145 = por %p143, %p144
      %s146 = ssub.s32 %s28, %s35
      %p147 = scmp.eq.s32.totalorder %s146, 0
      %s149 = sadd.s32 %s148, 1
      %s150 = scalar_select %p147, %s148, %s149
      %p153 = pneg %p147
      %p154 = scmp.eq.s32.totalorder %s28, 1
      %p155 = por %p153, %p154
      %p156 = scmp.ne.s32.totalorder %s148, %s151
      %p157 = scmp.eq.s32.totalorder %s28, 0
      %p158 = por %p156, %p157
      %p159 = scmp.ne.s32.totalorder %s148, %s151
      %p160 = scmp.eq.s32.totalorder %s33, 1
      %p161 = por %p159, %p160
      %p162 = scmp.ne.s32.totalorder %s151, %s152
      %p163 = scmp.eq.s32.totalorder %s33, 0
      %p164 = por %p162, %p163
      %p165 = scmp.ne.s32.totalorder %s151, %s152
      %p166 = scmp.eq.s32.totalorder %s34, 1
      %p167 = por %p165, %p166
      %p169 = scmp.ne.s32.totalorder %s152, %s168
      %p170 = scmp.eq.s32.totalorder %s34, 0
      %p171 = por %p169, %p170
      %s172 = ssub.s32 %s28, %s35
      %p173 = scmp.eq.s32.totalorder %s172, 0
      %s175 = sadd.s32 %s174, 1
      %s176 = scalar_select %p173, %s174, %s175
      %p179 = pneg %p173
      %p180 = scmp.eq.s32.totalorder %s28, 1
      %p181 = por %p179, %p180
      %p182 = scmp.ne.s32.totalorder %s174, %s177
      %p183 = scmp.eq.s32.totalorder %s28, 0
      %p184 = por %p182, %p183
      %p185 = scmp.ne.s32.totalorder %s174, %s177
      %p186 = scmp.eq.s32.totalorder %s33, 1
      %p187 = por %p185, %p186
      %p188 = scmp.ne.s32.totalorder %s177, %s178
      %p189 = scmp.eq.s32.totalorder %s33, 0
      %p190 = por %p188, %p189
      %p191 = scmp.ne.s32.totalorder %s177, %s178
      %p192 = scmp.eq.s32.totalorder %s34, 1
      %p193 = por %p191, %p192
      %p195 = scmp.ne.s32.totalorder %s178, %s194
      %p196 = scmp.eq.s32.totalorder %s34, 0
      %p197 = por %p195, %p196
      %s198 = ssub.s32 %s28, %s35
      %p199 = scmp.eq.s32.totalorder %s198, 0
      %s201 = sadd.s32 %s200, 1
      %s202 = scalar_select %p199, %s200, %s201
      %p205 = pneg %p199
      %p206 = scmp.eq.s32.totalorder %s28, 1
      %p207 = por %p205, %p206
      %p208 = scmp.ne.s32.totalorder %s200, %s203
      %p209 = scmp.eq.s32.totalorder %s28, 0
      %p210 = por %p208, %p209
      %p211 = scmp.ne.s32.totalorder %s200, %s203
      %p212 = scmp.eq.s32.totalorder %s33, 1
      %p213 = por %p211, %p212
      %p214 = scmp.ne.s32.totalorder %s203, %s204
      %p215 = scmp.eq.s32.totalorder %s33, 0
      %p216 = por %p214, %p215
      %p217 = scmp.ne.s32.totalorder %s203, %s204
      %p218 = scmp.eq.s32.totalorder %s34, 1
      %p219 = por %p217, %p218
      %p221 = scmp.ne.s32.totalorder %s204, %s220
      %p222 = scmp.eq.s32.totalorder %s34, 0
      %p223 = por %p221, %p222
      %s224 = ssub.s32 %s28, %s35
      %p225 = scmp.eq.s32.totalorder %s224, 0
      %s227 = sadd.s32 %s226, 1
      %s228 = scalar_select %p225, %s226, %s227
      %p231 = pneg %p225
      %p232 = scmp.eq.s32.totalorder %s28, 1
      %p233 = por %p231, %p232
      %p234 = scmp.ne.s32.totalorder %s226, %s229
      %p235 = scmp.eq.s32.totalorder %s28, 0
      %p236 = por %p234, %p235
      %p237 = scmp.ne.s32.totalorder %s226, %s229
      %p238 = scmp.eq.s32.totalorder %s33, 1
      %p239 = por %p237, %p238
      %p240 = scmp.ne.s32.totalorder %s229, %s230
      %p241 = scmp.eq.s32.totalorder %s33, 0
      %p242 = por %p240, %p241
      %p243 = scmp.ne.s32.totalorder %s229, %s230
      %p244 = scmp.eq.s32.totalorder %s34, 1
      %p245 = por %p243, %p244
      %p247 = scmp.ne.s32.totalorder %s230, %s246
      %p248 = scmp.eq.s32.totalorder %s34, 0
      %p249 = por %p247, %p248
      %s250 = ssub.s32 %s28, %s35
      %p251 = scmp.eq.s32.totalorder %s250, 0
      %s253 = sadd.s32 %s252, 1
      %s254 = scalar_select %p251, %s252, %s253
      %p257 = pneg %p251
      %p258 = scmp.eq.s32.totalorder %s28, 1
      %p259 = por %p257, %p258
      %p260 = scmp.ne.s32.totalorder %s252, %s255
      %p261 = scmp.eq.s32.totalorder %s28, 0
      %p262 = por %p260, %p261
      %p263 = scmp.ne.s32.totalorder %s252, %s255
      %p264 = scmp.eq.s32.totalorder %s33, 1
      %p265 = por %p263, %p264
      %p266 = scmp.ne.s32.totalorder %s255, %s256
      %p267 = scmp.eq.s32.totalorder %s33, 0
      %p268 = por %p266, %p267
      %p269 = scmp.ne.s32.totalorder %s255, %s256
      %p270 = scmp.eq.s32.totalorder %s34, 1
      %p271 = por %p269, %p270
      %p273 = scmp.ne.s32.totalorder %s256, %s272
      %p274 = scmp.eq.s32.totalorder %s34, 0
      %p275 = por %p273, %p274
      %s276 = ssub.s32 %s28, %s35
      %p277 = scmp.eq.s32.totalorder %s276, 0
      %s279 = sadd.s32 %s278, 1
      %s280 = scalar_select %p277, %s278, %s279
      %p283 = pneg %p277
      %p284 = scmp.eq.s32.totalorder %s28, 1
      %p285 = por %p283, %p284
      %p286 = scmp.ne.s32.totalorder %s278, %s281
      %p287 = scmp.eq.s32.totalorder %s28, 0
      %p288 = por %p286, %p287
      %p289 = scmp.ne.s32.totalorder %s278, %s281
      %p290 = scmp.eq.s32.totalorder %s33, 1
      %p291 = por %p289, %p290
      %p292 = scmp.ne.s32.totalorder %s281, %s282
      %p293 = scmp.eq.s32.totalorder %s33, 0
      %p294 = por %p292, %p293
      %p295 = scmp.ne.s32.totalorder %s281, %s282
      %p296 = scmp.eq.s32.totalorder %s34, 1
      %p297 = por %p295, %p296
      %p299 = scmp.ne.s32.totalorder %s282, %s298
      %p300 = scmp.eq.s32.totalorder %s34, 0
      %p301 = por %p299, %p300
      %s302 = ssub.s32 %s28, %s35
      %p303 = scmp.eq.s32.totalorder %s302, 0
      %s305 = sadd.s32 %s304, 1
      %s306 = scalar_select %p303, %s304, %s305
      %p309 = pneg %p303
      %p310 = scmp.eq.s32.totalorder %s28, 1
      %p311 = por %p309, %p310
      %p312 = scmp.ne.s32.totalorder %s304, %s307
      %p313 = scmp.eq.s32.totalorder %s28, 0
      %p314 = por %p312, %p313
      %p315 = scmp.ne.s32.totalorder %s304, %s307
      %p316 = scmp.eq.s32.totalorder %s33, 1
      %p317 = por %p315, %p316
      %p318 = scmp.ne.s32.totalorder %s307, %s308
      %p319 = scmp.eq.s32.totalorder %s33, 0
      %p320 = por %p318, %p319
      %p321 = scmp.ne.s32.totalorder %s307, %s308
      %p322 = scmp.eq.s32.totalorder %s34, 1
      %p323 = por %p321, %p322
      %p325 = scmp.ne.s32.totalorder %s308, %s324
      %p326 = scmp.eq.s32.totalorder %s34, 0
      %p327 = por %p325, %p326
      %s328 = ssub.s32 %s28, %s35
      %p329 = scmp.eq.s32.totalorder %s328, 0
      %s331 = sadd.s32 %s330, 1
      %s332 = scalar_select %p329, %s330, %s331
      %p335 = pneg %p329
      %p336 = scmp.eq.s32.totalorder %s28, 1
      %p337 = por %p335, %p336
      %p338 = scmp.ne.s32.totalorder %s330, %s333
      %p339 = scmp.eq.s32.totalorder %s28, 0
      %p340 = por %p338, %p339
      %p341 = scmp.ne.s32.totalorder %s330, %s333
      %p342 = scmp.eq.s32.totalorder %s33, 1
      %p343 = por %p341, %p342
      %p344 = scmp.ne.s32.totalorder %s333, %s334
      %p345 = scmp.eq.s32.totalorder %s33, 0
      %p346 = por %p344, %p345
      %p347 = scmp.ne.s32.totalorder %s333, %s334
      %p348 = scmp.eq.s32.totalorder %s34, 1
      %p349 = por %p347, %p348
      %p351 = scmp.ne.s32.totalorder %s334, %s350
      %p352 = scmp.eq.s32.totalorder %s34, 0
      %p353 = por %p351, %p352
      %s354 = ssub.s32 %s28, %s35
      %p355 = scmp.eq.s32.totalorder %s354, 0
      %s357 = sadd.s32 %s356, 1
      %s358 = scalar_select %p355, %s356, %s357
      %p361 = pneg %p355
      %p362 = scmp.eq.s32.totalorder %s28, 1
      %p363 = por %p361, %p362
      %p364 = scmp.ne.s32.totalorder %s356, %s359
      %p365 = scmp.eq.s32.totalorder %s28, 0
      %p366 = por %p364, %p365
      %p367 = scmp.ne.s32.totalorder %s356, %s359
      %p368 = scmp.eq.s32.totalorder %s33, 1
      %p369 = por %p367, %p368
      %p370 = scmp.ne.s32.totalorder %s359, %s360
      %p371 = scmp.eq.s32.totalorder %s33, 0
      %p372 = por %p370, %p371
      %p373 = scmp.ne.s32.totalorder %s359, %s360
      %p374 = scmp.eq.s32.totalorder %s34, 1
      %p375 = por %p373, %p374
      %p377 = scmp.ne.s32.totalorder %s360, %s376
      %p378 = scmp.eq.s32.totalorder %s34, 0
      %p379 = por %p377, %p378
      %s380 = ssub.s32 %s28, %s35
      %p381 = scmp.eq.s32.totalorder %s380, 0
      %s383 = sadd.s32 %s382, 1
      %s384 = scalar_select %p381, %s382, %s383
      %p387 = pneg %p381
      %p388 = scmp.eq.s32.totalorder %s28, 1
      %p389 = por %p387, %p388
      %p390 = scmp.ne.s32.totalorder %s382, %s385
      %p391 = scmp.eq.s32.totalorder %s28, 0
      %p392 = por %p390, %p391
      %p393 = scmp.ne.s32.totalorder %s382, %s385
      %p394 = scmp.eq.s32.totalorder %s33, 1
      %p395 = por %p393, %p394
      %p396 = scmp.ne.s32.totalorder %s385, %s386
      %p397 = scmp.eq.s32.totalorder %s33, 0
      %p398 = por %p396, %p397
      %p399 = scmp.ne.s32.totalorder %s385, %s386
      %p400 = scmp.eq.s32.totalorder %s34, 1
      %p401 = por %p399, %p400
      %p403 = scmp.ne.s32.totalorder %s386, %s402
      %p404 = scmp.eq.s32.totalorder %s34, 0
      %p405 = por %p403, %p404
      %s406 = ssub.s32 %s28, %s35
      %p407 = scmp.eq.s32.totalorder %s406, 0
      %s409 = sadd.s32 %s408, 1
      %s410 = scalar_select %p407, %s408, %s409
      %p413 = pneg %p407
      %p414 = scmp.eq.s32.totalorder %s28, 1
      %p415 = por %p413, %p414
      %p416 = scmp.ne.s32.totalorder %s408, %s411
      %p417 = scmp.eq.s32.totalorder %s28, 0
      %p418 = por %p416, %p417
      %p419 = scmp.ne.s32.totalorder %s408, %s411
      %p420 = scmp.eq.s32.totalorder %s33, 1
      %p421 = por %p419, %p420
      %p422 = scmp.ne.s32.totalorder %s411, %s412
      %p423 = scmp.eq.s32.totalorder %s33, 0
      %p424 = por %p422, %p423
      %p425 = scmp.ne.s32.totalorder %s411, %s412
      %p426 = scmp.eq.s32.totalorder %s34, 1
      %p427 = por %p425, %p426
      %p429 = scmp.ne.s32.totalorder %s412, %s428
      %p430 = scmp.eq.s32.totalorder %s34, 0
      %p431 = por %p429, %p430
      %s433 = sadd.s32 %s432, 1
      %p436 = scmp.eq.s32.totalorder %s28, 1
      %p437 = scmp.ne.s32.totalorder %s432, %s434
      %p438 = scmp.eq.s32.totalorder %s28, 0
      %p439 = por %p437, %p438
      %p440 = scmp.ne.s32.totalorder %s432, %s434
      %p441 = scmp.eq.s32.totalorder %s33, 1
      %p442 = por %p440, %p441
      %p443 = scmp.ne.s32.totalorder %s434, %s435
      %p444 = scmp.eq.s32.totalorder %s33, 0
      %p445 = por %p443, %p444
      %p446 = scmp.ne.s32.totalorder %s434, %s435
      %p447 = scmp.eq.s32.totalorder %s34, 1
      %p448 = por %p446, %p447
      %p450 = scmp.ne.s32.totalorder %s435, %s449
      %p451 = scmp.eq.s32.totalorder %s34, 0
      %p452 = por %p450, %p451
      %s454 = sadd.s32 %s453, 1
      %p457 = scmp.eq.s32.totalorder %s28, 1
      %p458 = scmp.ne.s32.totalorder %s453, %s455
      %p459 = scmp.eq.s32.totalorder %s28, 0
      %p460 = por %p458, %p459
      %p461 = scmp.ne.s32.totalorder %s453, %s455
      %p462 = scmp.eq.s32.totalorder %s33, 1
      %p463 = por %p461, %p462
      %p464 = scmp.ne.s32.totalorder %s455, %s456
      %p465 = scmp.eq.s32.totalorder %s33, 0
      %p466 = por %p464, %p465
      %p467 = scmp.ne.s32.totalorder %s455, %s456
      %p468 = scmp.eq.s32.totalorder %s34, 1
      %p469 = por %p467, %p468
      %p471 = scmp.ne.s32.totalorder %s456, %s470
      %p472 = scmp.eq.s32.totalorder %s34, 0
      %p473 = por %p471, %p472
      %s475 = sadd.s32 %s474, 1
      %p478 = scmp.eq.s32.totalorder %s28, 1
      %p479 = scmp.ne.s32.totalorder %s474, %s476
      %p480 = scmp.eq.s32.totalorder %s28, 0
      %p481 = por %p479, %p480
      %p482 = scmp.ne.s32.totalorder %s474, %s476
      %p483 = scmp.eq.s32.totalorder %s33, 1
      %p484 = por %p482, %p483
      %p485 = scmp.ne.s32.totalorder %s476, %s477
      %p486 = scmp.eq.s32.totalorder %s33, 0
      %p487 = por %p485, %p486
      %p488 = scmp.ne.s32.totalorder %s476, %s477
      %p489 = scmp.eq.s32.totalorder %s34, 1
      %p490 = por %p488, %p489
      %p492 = scmp.ne.s32.totalorder %s477, %s491
      %p493 = scmp.eq.s32.totalorder %s34, 0
      %p494 = por %p492, %p493
      %p495 = scmp.le.s32.totalorder 1, %s28
      %p496 = scmp.lt.s32.totalorder %s28, 3
      %p497 = pnand %p495, %p496
      %p498 = pneg %p497
      // Predicated region
      $region9: #{codebert_classifier_forward.1} parent=5 // pred_check
        _
      $region10: #{codebert_classifier_forward.1} parent=5 // pred_check_branch
        %500 = sbr.rel (%p497) target = $region12
      $region11: #{codebert_classifier_forward.1} parent=5 // pred_region
        %s501 = ssub.s32 %s28, 1
        // Predicated region
        $region13: #{codebert_classifier_forward.1} parent=11 // pred_check
          %p502 = pneg %p49
        $region14: #{codebert_classifier_forward.1} parent=11 // pred_check_branch
          %504 = sbr.rel (%p502) target = $region16
        $region15: #{codebert_classifier_forward.1} parent=11 // pred_region
          _
        $region16: #{codebert_classifier_forward.1} parent=11 // pred_fallthru
          _
        // Predicated region
        $region17: #{codebert_classifier_forward.1} parent=11 // pred_check
          %p505 = pneg %p70
        $region18: #{codebert_classifier_forward.1} parent=11 // pred_check_branch
          %507 = sbr.rel (%p505) target = $region20
        $region19: #{codebert_classifier_forward.1} parent=11 // pred_region
          %s509 = ssub.s32 16, 16
          %510 = vsyncadd [#allocation4], %s509
          %s512 = sshll.u32 [#allocation3], 4
          %s513 = int_to_ptr.vmem [resolvable:$true] %s512
          %515 = dma.hbm_to_vmem [thread:$0]  %s1, 16, %s513, [#allocation4]
        $region20: #{codebert_classifier_forward.1} parent=11 // pred_fallthru
          _
        // Predicated region
        $region21: #{codebert_classifier_forward.1} parent=11 // pred_check
          %p516 = pneg %p91
        $region22: #{codebert_classifier_forward.1} parent=11 // pred_check_branch
          %518 = sbr.rel (%p516) target = $region24
        $region23: #{codebert_classifier_forward.1} parent=11 // pred_region
          %s520 = ssub.s32 16, 16
          %521 = vsyncadd [#allocation7], %s520
          %s523 = sshll.u32 [#allocation6], 4
          %s524 = int_to_ptr.vmem [resolvable:$true] %s523
          %526 = dma.hbm_to_vmem [thread:$0]  %s2, 16, %s524, [#allocation7]
        $region24: #{codebert_classifier_forward.1} parent=11 // pred_fallthru
          _
        // Predicated region
        $region25: #{codebert_classifier_forward.1} parent=11 // pred_check
          %p527 = pneg %p112
        $region26: #{codebert_classifier_forward.1} parent=11 // pred_check_branch
          %529 = sbr.rel (%p527) target = $region28
        $region27: #{codebert_classifier_forward.1} parent=11 // pred_region
          _
        $region28: #{codebert_classifier_forward.1} parent=11 // pred_fallthru
          _
        // Predicated region
        $region29: #{codebert_classifier_forward.1} parent=11 // pred_check
          %p530 = pneg %p445
        $region30: #{codebert_classifier_forward.1} parent=11 // pred_check_branch
          %532 = sbr.rel (%p530) target = $region32
        $region31: #{codebert_classifier_forward.1} parent=11 // pred_region
          %s534 = ssub.s32 1024, 1024
          %535 = vsyncadd [#allocation7], %s534
          %s536 = sshll.u32 [#allocation15], 4
          %s537 = int_to_ptr.vmem [resolvable:$true] %s536
          %542 = dma.hbm_to_vmem [thread:$0]  %s16, 1024, %s537, [#allocation7], 64, 64, 4
        $region32: #{codebert_classifier_forward.1} parent=11 // pred_fallthru
          _
        // Predicated region
        $region33: #{codebert_classifier_forward.1} parent=11 // pred_check
          %p543 = pneg %p466
        $region34: #{codebert_classifier_forward.1} parent=11 // pred_check_branch
          %545 = sbr.rel (%p543) target = $region36
        $region35: #{codebert_classifier_forward.1} parent=11 // pred_region
          %s547 = ssub.s32 16, 16
          %548 = vsyncadd [#allocation17], %s547
          %s550 = sshll.u32 [#allocation16], 4
          %s551 = int_to_ptr.vmem [resolvable:$true] %s550
          %553 = dma.hbm_to_vmem [thread:$0]  %s17, 16, %s551, [#allocation17]
        $region36: #{codebert_classifier_forward.1} parent=11 // pred_fallthru
          _
      $region12: #{codebert_classifier_forward.1} parent=5 // pred_fallthru
        _
      %p554 = scmp.lt.s32.totalorder %s28, 2
      // Predicated region
      $region37: #{codebert_classifier_forward.1} parent=5 // pred_check
        %p555 = pneg %p554
      $region38: #{codebert_classifier_forward.1} parent=5 // pred_check_branch
        %557 = sbr.rel (%p555) target = $region40
      $region39: #{codebert_classifier_forward.1} parent=5 // pred_region
        // Predicated region
        $region41: #{codebert_classifier_forward.1} parent=39 // pred_check
          %p558 = pneg %p132
        $region42: #{codebert_classifier_forward.1} parent=39 // pred_check_branch
          %560 = sbr.rel (%p558) target = $region44
        $region43: #{codebert_classifier_forward.1} parent=39 // pred_region
          %p561 = scmp.lt.s32.totalorder %s28, 1
          %s562 = scalar_select %p561, %s28, 1
          %s563 = smul.addr %s562, 48
          %s564 = smul.addr %s563, 4
          %s565 = scalar_lea.vmem %s4, %s564
        $region44: #{codebert_classifier_forward.1} parent=39 // pred_fallthru
          _
        // Predicated region
        $region45: #{codebert_classifier_forward.1} parent=39 // pred_check
          %p566 = pneg %p158
        $region46: #{codebert_classifier_forward.1} parent=39 // pred_check_branch
          %568 = sbr.rel (%p566) target = $region48
        $region47: #{codebert_classifier_forward.1} parent=39 // pred_region
          %p569 = scmp.lt.s32.totalorder %s28, 1
          %s570 = scalar_select %p569, %s28, 1
          %s571 = smul.addr %s570, 3
          %s572 = scalar_lea.vmem %s5, %s571
        $region48: #{codebert_classifier_forward.1} parent=39 // pred_fallthru
          _
        // Predicated region
        $region49: #{codebert_classifier_forward.1} parent=39 // pred_check
          %p573 = pneg %p184
        $region50: #{codebert_classifier_forward.1} parent=39 // pred_check_branch
          %575 = sbr.rel (%p573) target = $region52
        $region51: #{codebert_classifier_forward.1} parent=39 // pred_region
          %s576 = sand.u32 %s28, 1
          %s577 = scalar_lea.sflag [#allocation4], %s576
          %s578 = sand.u32 %s174, 1
          %s579 = smul.addr %s578, 64
          %s580 = scalar_lea.vmem [#allocation8], %s579
          %s582 = ssub.s32 1024, 1024
          %583 = vsyncadd %s577, %s582
          %s584 = smul.addr %s28, 16
          %s585 = smul.addr %s584, 64
          %s586 = scalar_lea.hbm %s6, %s585
          %s587 = sshll.u32 %s580, 4
          %s588 = int_to_ptr.vmem [resolvable:$true] %s587
          %593 = dma.hbm_to_vmem [thread:$0]  %s586, 1024, %s588, %s577, 64, 64, 4
        $region52: #{codebert_classifier_forward.1} parent=39 // pred_fallthru
          _
        // Predicated region
        $region53: #{codebert_classifier_forward.1} parent=39 // pred_check
          %p594 = pneg %p210
        $region54: #{codebert_classifier_forward.1} parent=39 // pred_check_branch
          %596 = sbr.rel (%p594) target = $region56
        $region55: #{codebert_classifier_forward.1} parent=39 // pred_region
          %p597 = scmp.lt.s32.totalorder %s28, 1
          %s598 = scalar_select %p597, %s28, 1
          %s599 = scalar_lea.vmem %s7, %s598
        $region56: #{codebert_classifier_forward.1} parent=39 // pred_fallthru
          _
        // Predicated region
        $region57: #{codebert_classifier_forward.1} parent=39 // pred_check
          %p600 = pneg %p236
        $region58: #{codebert_classifier_forward.1} parent=39 // pred_check_branch
          %602 = sbr.rel (%p600) target = $region60
        $region59: #{codebert_classifier_forward.1} parent=39 // pred_region
          %s603 = sand.u32 %s28, 1
          %s604 = scalar_lea.sflag [#allocation4], %s603
          %s605 = sand.u32 %s226, 1
          %s606 = scalar_lea.vmem [#allocation9], %s605
          %s608 = ssub.s32 16, 16
          %609 = vsyncadd %s604, %s608
          %s610 = smul.addr %s28, 16
          %s611 = scalar_lea.hbm %s8, %s610
          %s613 = sshll.u32 %s606, 4
          %s614 = int_to_ptr.vmem [resolvable:$true] %s613
          %616 = dma.hbm_to_vmem [thread:$0]  %s611, 16, %s614, %s604
        $region60: #{codebert_classifier_forward.1} parent=39 // pred_fallthru
          _
        // Predicated region
        $region61: #{codebert_classifier_forward.1} parent=39 // pred_check
          %p617 = pneg %p262
        $region62: #{codebert_classifier_forward.1} parent=39 // pred_check_branch
          %619 = sbr.rel (%p617) target = $region64
        $region63: #{codebert_classifier_forward.1} parent=39 // pred_region
          %s620 = sand.u32 %s28, 1
          %s621 = scalar_lea.sflag [#allocation4], %s620
          %s622 = sand.u32 %s252, 1
          %s623 = scalar_lea.vmem [#allocation10], %s622
          %s625 = ssub.s32 16, 16
          %626 = vsyncadd %s621, %s625
          %s627 = smul.addr %s28, 16
          %s628 = scalar_lea.hbm %s9, %s627
          %s630 = sshll.u32 %s623, 4
          %s631 = int_to_ptr.vmem [resolvable:$true] %s630
          %633 = dma.hbm_to_vmem [thread:$0]  %s628, 16, %s631, %s621
        $region64: #{codebert_classifier_forward.1} parent=39 // pred_fallthru
          _
        // Predicated region
        $region65: #{codebert_classifier_forward.1} parent=39 // pred_check
          %p634 = pneg %p288
        $region66: #{codebert_classifier_forward.1} parent=39 // pred_check_branch
          %636 = sbr.rel (%p634) target = $region68
        $region67: #{codebert_classifier_forward.1} parent=39 // pred_region
          %s637 = sand.u32 %s28, 1
          %s638 = scalar_lea.sflag [#allocation4], %s637
          %s639 = sand.u32 %s278, 1
          %s640 = smul.addr %s639, 256
          %s641 = scalar_lea.vmem [#allocation11], %s640
          %s643 = ssub.s32 4096, 4096
          %644 = vsyncadd %s638, %s643
          %s645 = smul.addr %s28, 64
          %s646 = smul.addr %s645, 64
          %s647 = scalar_lea.hbm %s10, %s646
          %s648 = sshll.u32 %s641, 4
          %s649 = int_to_ptr.vmem [resolvable:$true] %s648
          %654 = dma.hbm_to_vmem [thread:$0]  %s647, 4096, %s649, %s638, 256, 256, 16
        $region68: #{codebert_classifier_forward.1} parent=39 // pred_fallthru
          _
        // Predicated region
        $region69: #{codebert_classifier_forward.1} parent=39 // pred_check
          %p655 = pneg %p314
        $region70: #{codebert_classifier_forward.1} parent=39 // pred_check_branch
          %657 = sbr.rel (%p655) target = $region72
        $region71: #{codebert_classifier_forward.1} parent=39 // pred_region
          %p658 = scmp.lt.s32.totalorder %s28, 1
          %s659 = scalar_select %p658, %s28, 1
          %s660 = smul.addr %s659, 4
          %s661 = scalar_lea.vmem %s11, %s660
        $region72: #{codebert_classifier_forward.1} parent=39 // pred_fallthru
          _
        // Predicated region
        $region73: #{codebert_classifier_forward.1} parent=39 // pred_check
          %p662 = pneg %p340
        $region74: #{codebert_classifier_forward.1} parent=39 // pred_check_branch
          %664 = sbr.rel (%p662) target = $region76
        $region75: #{codebert_classifier_forward.1} parent=39 // pred_region
          %s665 = sand.u32 %s28, 1
          %s666 = scalar_lea.sflag [#allocation4], %s665
          %s667 = sand.u32 %s330, 1
          %s668 = smul.addr %s667, 256
          %s669 = scalar_lea.vmem [#allocation12], %s668
          %s671 = ssub.s32 4096, 4096
          %672 = vsyncadd %s666, %s671
          %s673 = smul.addr %s28, 64
          %s674 = smul.addr %s673, 64
          %s675 = scalar_lea.hbm %s12, %s674
          %s676 = sshll.u32 %s669, 4
          %s677 = int_to_ptr.vmem [resolvable:$true] %s676
          %682 = dma.hbm_to_vmem [thread:$0]  %s675, 4096, %s677, %s666, 64, 64, 4
        $region76: #{codebert_classifier_forward.1} parent=39 // pred_fallthru
          _
        // Predicated region
        $region77: #{codebert_classifier_forward.1} parent=39 // pred_check
          %p683 = pneg %p366
        $region78: #{codebert_classifier_forward.1} parent=39 // pred_check_branch
          %685 = sbr.rel (%p683) target = $region80
        $region79: #{codebert_classifier_forward.1} parent=39 // pred_region
          %p686 = scmp.lt.s32.totalorder %s28, 1
          %s687 = scalar_select %p686, %s28, 1
          %s688 = scalar_lea.vmem %s13, %s687
        $region80: #{codebert_classifier_forward.1} parent=39 // pred_fallthru
          _
        // Predicated region
        $region81: #{codebert_classifier_forward.1} parent=39 // pred_check
          %p689 = pneg %p392
        $region82: #{codebert_classifier_forward.1} parent=39 // pred_check_branch
          %691 = sbr.rel (%p689) target = $region84
        $region83: #{codebert_classifier_forward.1} parent=39 // pred_region
          %s692 = sand.u32 %s28, 1
          %s693 = scalar_lea.sflag [#allocation4], %s692
          %s694 = sand.u32 %s382, 1
          %s695 = scalar_lea.vmem [#allocation13], %s694
          %s697 = ssub.s32 16, 16
          %698 = vsyncadd %s693, %s697
          %s699 = smul.addr %s28, 16
          %s700 = scalar_lea.hbm %s14, %s699
          %s702 = sshll.u32 %s695, 4
          %s703 = int_to_ptr.vmem [resolvable:$true] %s702
          %705 = dma.hbm_to_vmem [thread:$0]  %s700, 16, %s703, %s693
        $region84: #{codebert_classifier_forward.1} parent=39 // pred_fallthru
          _
        // Predicated region
        $region85: #{codebert_classifier_forward.1} parent=39 // pred_check
          %p706 = pneg %p418
        $region86: #{codebert_classifier_forward.1} parent=39 // pred_check_branch
          %708 = sbr.rel (%p706) target = $region88
        $region87: #{codebert_classifier_forward.1} parent=39 // pred_region
          %s709 = sand.u32 %s28, 1
          %s710 = scalar_lea.sflag [#allocation4], %s709
          %s711 = sand.u32 %s408, 1
          %s712 = scalar_lea.vmem [#allocation14], %s711
          %s714 = ssub.s32 16, 16
          %715 = vsyncadd %s710, %s714
          %s716 = smul.addr %s28, 16
          %s717 = scalar_lea.hbm %s15, %s716
          %s719 = sshll.u32 %s712, 4
          %s720 = int_to_ptr.vmem [resolvable:$true] %s719
          %722 = dma.hbm_to_vmem [thread:$0]  %s717, 16, %s720, %s710
        $region88: #{codebert_classifier_forward.1} parent=39 // pred_fallthru
          _
      $region40: #{codebert_classifier_forward.1} parent=5 // pred_fallthru
        _
      %p723 = scmp.le.s32.totalorder 1, %s28
      %p724 = scmp.lt.s32.totalorder %s28, 3
      %p725 = pnand %p723, %p724
      %p726 = pneg %p725
      // Predicated region
      $region89: #{codebert_classifier_forward.1} parent=5 // pred_check
        _
      $region90: #{codebert_classifier_forward.1} parent=5 // pred_check_branch
        %728 = sbr.rel (%p725) target = $region92
      $region91: #{codebert_classifier_forward.1} parent=5 // pred_region
        %s729 = ssub.s32 %s28, 1
        // Predicated region
        $region93: #{codebert_classifier_forward.1} parent=91 // pred_check
          %p730 = pneg %p70
        $region94: #{codebert_classifier_forward.1} parent=91 // pred_check_branch
          %732 = sbr.rel (%p730) target = $region96
        $region95: #{codebert_classifier_forward.1} parent=91 // pred_region
          %733 = dma.done [#allocation4], 16
        $region96: #{codebert_classifier_forward.1} parent=91 // pred_fallthru
          _
        // Predicated region
        $region97: #{codebert_classifier_forward.1} parent=91 // pred_check
          %p734 = pneg %p91
        $region98: #{codebert_classifier_forward.1} parent=91 // pred_check_branch
          %736 = sbr.rel (%p734) target = $region100
        $region99: #{codebert_classifier_forward.1} parent=91 // pred_region
          %737 = dma.done [#allocation7], 16
        $region100: #{codebert_classifier_forward.1} parent=91 // pred_fallthru
          _
        %s738 = sand.u32 %s33, 1
        %s739 = scalar_lea.sflag [#allocation4], %s738
        %s740 = sand.u32 %s177, 1
        %s741 = smul.addr %s740, 64
        %s742 = scalar_lea.vmem [#allocation8], %s741
        // Predicated region
        $region101: #{codebert_classifier_forward.1} parent=91 // pred_check
          %p743 = pneg %p190
        $region102: #{codebert_classifier_forward.1} parent=91 // pred_check_branch
          %745 = sbr.rel (%p743) target = $region104
        $region103: #{codebert_classifier_forward.1} parent=91 // pred_region
          %746 = dma.done %s739, 1024
        $region104: #{codebert_classifier_forward.1} parent=91 // pred_fallthru
          _
        %s747 = sand.u32 %s33, 1
        %s748 = scalar_lea.sflag [#allocation4], %s747
        %s749 = sand.u32 %s229, 1
        %s750 = scalar_lea.vmem [#allocation9], %s749
        // Predicated region
        $region105: #{codebert_classifier_forward.1} parent=91 // pred_check
          %p751 = pneg %p242
        $region106: #{codebert_classifier_forward.1} parent=91 // pred_check_branch
          %753 = sbr.rel (%p751) target = $region108
        $region107: #{codebert_classifier_forward.1} parent=91 // pred_region
          %754 = dma.done %s748, 16
        $region108: #{codebert_classifier_forward.1} parent=91 // pred_fallthru
          _
        %s755 = sand.u32 %s33, 1
        %s756 = scalar_lea.sflag [#allocation4], %s755
        %s757 = sand.u32 %s255, 1
        %s758 = scalar_lea.vmem [#allocation10], %s757
        // Predicated region
        $region109: #{codebert_classifier_forward.1} parent=91 // pred_check
          %p759 = pneg %p268
        $region110: #{codebert_classifier_forward.1} parent=91 // pred_check_branch
          %761 = sbr.rel (%p759) target = $region112
        $region111: #{codebert_classifier_forward.1} parent=91 // pred_region
          %762 = dma.done %s756, 16
        $region112: #{codebert_classifier_forward.1} parent=91 // pred_fallthru
          _
        %s763 = sand.u32 %s33, 1
        %s764 = scalar_lea.sflag [#allocation4], %s763
        %s765 = sand.u32 %s281, 1
        %s766 = smul.addr %s765, 256
        %s767 = scalar_lea.vmem [#allocation11], %s766
        // Predicated region
        $region113: #{codebert_classifier_forward.1} parent=91 // pred_check
          %p768 = pneg %p294
        $region114: #{codebert_classifier_forward.1} parent=91 // pred_check_branch
          %770 = sbr.rel (%p768) target = $region116
        $region115: #{codebert_classifier_forward.1} parent=91 // pred_region
          %771 = dma.done %s764, 4096
        $region116: #{codebert_classifier_forward.1} parent=91 // pred_fallthru
          _
        %s772 = sand.u32 %s33, 1
        %s773 = scalar_lea.sflag [#allocation4], %s772
        %s774 = sand.u32 %s333, 1
        %s775 = smul.addr %s774, 256
        %s776 = scalar_lea.vmem [#allocation12], %s775
        // Predicated region
        $region117: #{codebert_classifier_forward.1} parent=91 // pred_check
          %p777 = pneg %p346
        $region118: #{codebert_classifier_forward.1} parent=91 // pred_check_branch
          %779 = sbr.rel (%p777) target = $region120
        $region119: #{codebert_classifier_forward.1} parent=91 // pred_region
          %780 = dma.done %s773, 4096
        $region120: #{codebert_classifier_forward.1} parent=91 // pred_fallthru
          _
        %s781 = sand.u32 %s33, 1
        %s782 = scalar_lea.sflag [#allocation4], %s781
        %s783 = sand.u32 %s385, 1
        %s784 = scalar_lea.vmem [#allocation13], %s783
        // Predicated region
        $region121: #{codebert_classifier_forward.1} parent=91 // pred_check
          %p785 = pneg %p398
        $region122: #{codebert_classifier_forward.1} parent=91 // pred_check_branch
          %787 = sbr.rel (%p785) target = $region124
        $region123: #{codebert_classifier_forward.1} parent=91 // pred_region
          %788 = dma.done %s782, 16
        $region124: #{codebert_classifier_forward.1} parent=91 // pred_fallthru
          _
        %s789 = sand.u32 %s33, 1
        %s790 = scalar_lea.sflag [#allocation4], %s789
        %s791 = sand.u32 %s411, 1
        %s792 = scalar_lea.vmem [#allocation14], %s791
        // Predicated region
        $region125: #{codebert_classifier_forward.1} parent=91 // pred_check
          %p793 = pneg %p424
        $region126: #{codebert_classifier_forward.1} parent=91 // pred_check_branch
          %795 = sbr.rel (%p793) target = $region128
        $region127: #{codebert_classifier_forward.1} parent=91 // pred_region
          %796 = dma.done %s790, 16
        $region128: #{codebert_classifier_forward.1} parent=91 // pred_fallthru
          _
        // Predicated region
        $region129: #{codebert_classifier_forward.1} parent=91 // pred_check
          %p797 = pneg %p445
        $region130: #{codebert_classifier_forward.1} parent=91 // pred_check_branch
          %799 = sbr.rel (%p797) target = $region132
        $region131: #{codebert_classifier_forward.1} parent=91 // pred_region
          %800 = dma.done [#allocation7], 1024
        $region132: #{codebert_classifier_forward.1} parent=91 // pred_fallthru
          _
        // Predicated region
        $region133: #{codebert_classifier_forward.1} parent=91 // pred_check
          %p801 = pneg %p466
        $region134: #{codebert_classifier_forward.1} parent=91 // pred_check_branch
          %803 = sbr.rel (%p801) target = $region136
        $region135: #{codebert_classifier_forward.1} parent=91 // pred_region
          %804 = dma.done [#allocation17], 16
        $region136: #{codebert_classifier_forward.1} parent=91 // pred_fallthru
          _
        %p805 = pneg %p49
        %p806 = pneg %p46
        %p807 = pneg %p70
        %p808 = pneg %p67
        %p809 = pneg %p91
        %p810 = pneg %p88
        %p811 = pneg %p112
        %p812 = pneg %p109
        %p813 = scmp.lt.s32.totalorder %s33, 1
        %s814 = scalar_select %p813, %s33, 1
        %s815 = smul.addr %s814, 48
        %s816 = smul.addr %s815, 4
        %s817 = scalar_lea.vmem %s4, %s816
        %p818 = pneg %p138
        %p819 = pneg %p135
        %p820 = scmp.lt.s32.totalorder %s33, 1
        %s821 = scalar_select %p820, %s33, 1
        %s822 = smul.addr %s821, 3
        %s823 = scalar_lea.vmem %s5, %s822
        %p824 = pneg %p164
        %p825 = pneg %p161
        %s826 = sand.u32 %s33, 1
        %s827 = scalar_lea.sflag [#allocation4], %s826
        %s828 = sand.u32 %s177, 1
        %s829 = smul.addr %s828, 64
        %s830 = scalar_lea.vmem [#allocation8], %s829
        %p831 = pneg %p190
        %p832 = pneg %p187
        %p833 = scmp.lt.s32.totalorder %s33, 1
        %s834 = scalar_select %p833, %s33, 1
        %s835 = scalar_lea.vmem %s7, %s834
        %p836 = pneg %p216
        %p837 = pneg %p213
        %s838 = sand.u32 %s33, 1
        %s839 = scalar_lea.sflag [#allocation4], %s838
        %s840 = sand.u32 %s229, 1
        %s841 = scalar_lea.vmem [#allocation9], %s840
        %p842 = pneg %p242
        %p843 = pneg %p239
        %s844 = sand.u32 %s33, 1
        %s845 = scalar_lea.sflag [#allocation4], %s844
        %s846 = sand.u32 %s255, 1
        %s847 = scalar_lea.vmem [#allocation10], %s846
        %p848 = pneg %p268
        %p849 = pneg %p265
        %s850 = sand.u32 %s33, 1
        %s851 = scalar_lea.sflag [#allocation4], %s850
        %s852 = sand.u32 %s281, 1
        %s853 = smul.addr %s852, 256
        %s854 = scalar_lea.vmem [#allocation11], %s853
        %p855 = pneg %p294
        %p856 = pneg %p291
        %p857 = scmp.lt.s32.totalorder %s33, 1
        %s858 = scalar_select %p857, %s33, 1
        %s859 = smul.addr %s858, 4
        %s860 = scalar_lea.vmem %s11, %s859
        %p861 = pneg %p320
        %p862 = pneg %p317
        %s863 = sand.u32 %s33, 1
        %s864 = scalar_lea.sflag [#allocation4], %s863
        %s865 = sand.u32 %s333, 1
        %s866 = smul.addr %s865, 256
        %s867 = scalar_lea.vmem [#allocation12], %s866
        %p868 = pneg %p346
        %p869 = pneg %p343
        %p870 = scmp.lt.s32.totalorder %s33, 1
        %s871 = scalar_select %p870, %s33, 1
        %s872 = scalar_lea.vmem %s13, %s871
        %p873 = pneg %p372
        %p874 = pneg %p369
        %s875 = sand.u32 %s33, 1
        %s876 = scalar_lea.sflag [#allocation4], %s875
        %s877 = sand.u32 %s385, 1
        %s878 = scalar_lea.vmem [#allocation13], %s877
        %p879 = pneg %p398
        %p880 = pneg %p395
        %s881 = sand.u32 %s33, 1
        %s882 = scalar_lea.sflag [#allocation4], %s881
        %s883 = sand.u32 %s411, 1
        %s884 = scalar_lea.vmem [#allocation14], %s883
        %p885 = pneg %p424
        %p886 = pneg %p421
        %p887 = pneg %p445
        %p888 = pneg %p442
        %p889 = pneg %p466
        %p890 = pneg %p463
        %p891 = pneg %p487
        %p892 = pneg %p484
        %p893 = scmp.lt.s32.totalorder %s33, 1
        %s894 = scalar_select %p893, %s33, 1
        %s895 = smul.addr %s894, 48
        %s896 = smul.addr %s895, 4
        %s897 = scalar_lea.vmem %s4, %s896
        %p898 = scmp.lt.s32.totalorder %s33, 1
        %s899 = scalar_select %p898, %s33, 1
        %s900 = smul.addr %s899, 3
        %s901 = scalar_lea.vmem %s5, %s900
        %p902 = scmp.lt.s32.totalorder %s33, 1
        %s903 = scalar_select %p902, %s33, 1
        %s904 = scalar_lea.vmem %s7, %s903
        %p905 = scmp.lt.s32.totalorder %s33, 1
        %s906 = scalar_select %p905, %s33, 1
        %s907 = smul.addr %s906, 4
        %s908 = scalar_lea.vmem %s11, %s907
        %p909 = scmp.lt.s32.totalorder %s33, 1
        %s910 = scalar_select %p909, %s33, 1
        %s911 = scalar_lea.vmem %s13, %s910
        %p913 = scmp.eq.s32.totalorder %s33, 0
        // Predicated region
        $region137: #{codebert_classifier_forward.1} parent=91 // pred_check
          %p914 = pneg %p913
        $region138: #{codebert_classifier_forward.1} parent=91 // pred_check_branch
          %916 = sbr.rel (%p914) target = $region140
        $region139: #{codebert_classifier_forward.1} parent=91 // pred_region
          %v917 = vld [vmem:[%s0] sm:$0xff]
          %v918 = vld [vmem:[%s0 + $0x8] sm:$0xff]
          %v919 = vld [vmem:[#allocation3] sm:$0x1]
          %v920 = vld [vmem:[#allocation6] sm:$0x1]
          %921 = vadd.xlane.f32.xlu0 %v917
          %v922 = vpop.xlane.xlu0 %921
          %923 = vadd.xlane.f32.xlu0 %v918
          %v924 = vpop.xlane.xlu0 %923
          %v925 = vrcp.pop 128.0
          %v926 = vmul.f32 %v922, %v925
          %v927 = vmul.f32 %v924, %v925
          %v928 = vsub.f32 %v917, %v926
          %v929 = vsub.f32 %v918, %v927
          %v930 = vmul.f32 %v928, %v928
          %v931 = vmul.f32 %v929, %v929
          %932 = vadd.xlane.f32.xlu0 %v930
          %v933 = vpop.xlane.xlu0 %932
          %934 = vadd.xlane.f32.xlu0 %v931
          %v935 = vpop.xlane.xlu0 %934
          %v936 = vmul.f32 %v933, %v925
          %v937 = vmul.f32 %v935, %v925
          %v938 = vadd.f32 %v936, 1e-05
          %v939 = vadd.f32 %v937, 1e-05
          %v940 = vrsqrt.pop %v938
          %v941 = vrsqrt.pop %v939
          %v942 = vmul.f32 %v928, %v940
          %v943 = vmul.f32 %v929, %v941
          %v945 = vlaneseq
          %v946 = vshrl.u32 %v945, 7
          %v947 = vsub.s32 0, %v946
          %v948 = vrot.slane %v919, %v947
          %v950 = vmul.f32 %v942, %v948
          %v951 = vmul.f32 %v943, %v948
          %v953 = vlaneseq
          %v954 = vshrl.u32 %v953, 7
          %v955 = vsub.s32 0, %v954
          %v956 = vrot.slane %v920, %v955
          %v958 = vadd.f32 %v950, %v956
          %v959 = vadd.f32 %v951, %v956
          %960 = vst [vmem:[#allocation2] sm:$0xff] %v958
          %961 = vst [vmem:[#allocation2 + $0x8] sm:$0xff] %v959
        $region140: #{codebert_classifier_forward.1} parent=91 // pred_fallthru
          _
        %v962 = vld [vmem:[#allocation2] sm:$0xff]
        %v963 = vld [vmem:[#allocation2 + $0x8] sm:$0xff]
        %v964 = vld [vmem:[%s897] sm:$0xff]
        %v965 = vld [vmem:[%s897 + $0x8] sm:$0xf]
        %v966 = vld [vmem:[%s897 + $0xc] sm:$0xff]
        %v967 = vld [vmem:[%s897 + $0x14] sm:$0xf]
        %v968 = vld [vmem:[%s897 + $0x18] sm:$0xff]
        %v969 = vld [vmem:[%s897 + $0x20] sm:$0xf]
        %v970 = vld [vmem:[%s897 + $0x24] sm:$0xff]
        %v971 = vld [vmem:[%s897 + $0x2c] sm:$0xf]
        %v972 = vld [vmem:[%s897 + $0x30] sm:$0xff]
        %v973 = vld [vmem:[%s897 + $0x38] sm:$0xf]
        %v974 = vld [vmem:[%s897 + $0x3c] sm:$0xff]
        %v975 = vld [vmem:[%s897 + $0x44] sm:$0xf]
        %v976 = vld [vmem:[%s897 + $0x48] sm:$0xff]
        %v977 = vld [vmem:[%s897 + $0x50] sm:$0xf]
        %v978 = vld [vmem:[%s897 + $0x54] sm:$0xff]
        %v979 = vld [vmem:[%s897 + $0x5c] sm:$0xf]
        %v980 = vld [vmem:[%s897 + $0x60] sm:$0xff]
        %v981 = vld [vmem:[%s897 + $0x68] sm:$0xf]
        %v982 = vld [vmem:[%s897 + $0x6c] sm:$0xff]
        %v983 = vld [vmem:[%s897 + $0x74] sm:$0xf]
        %v984 = vld [vmem:[%s897 + $0x78] sm:$0xff]
        %v985 = vld [vmem:[%s897 + $0x80] sm:$0xf]
        %v986 = vld [vmem:[%s897 + $0x84] sm:$0xff]
        %v987 = vld [vmem:[%s897 + $0x8c] sm:$0xf]
        %v988 = vld [vmem:[%s897 + $0x90] sm:$0xff]
        %v989 = vld [vmem:[%s897 + $0x98] sm:$0xf]
        %v990 = vld [vmem:[%s897 + $0x9c] sm:$0xff]
        %v991 = vld [vmem:[%s897 + $0xa4] sm:$0xf]
        %v992 = vld [vmem:[%s897 + $0xa8] sm:$0xff]
        %v993 = vld [vmem:[%s897 + $0xb0] sm:$0xf]
        %v994 = vld [vmem:[%s897 + $0xb4] sm:$0xff]
        %v995 = vld [vmem:[%s897 + $0xbc] sm:$0xf]
        %v996 = vld [vmem:[%s901] sm:$0x7]
        %v997 = vpack.c.bf16 %v963, %v962
        %v999 = vlaneseq
        %v1000 = vshrl.u32 %v999, 7
        %v1001 = vsub.s32 0, %v1000
        %v1002 = vrot.slane %v996, %v1001
        %v1003 = vlaneseq
        %v1004 = vshrl.u32 %v1003, 7
        %v1005 = vsub.s32 1, %v1004
        %v1006 = vrot.slane %v996, %v1005
        %v1007 = vlaneseq
        %v1008 = vshrl.u32 %v1007, 7
        %v1009 = vsub.s32 2, %v1008
        %v1010 = vrot.slane %v996, %v1009
        %v1046 = vunpack.c.l.b16 %v964
        %v1047 = vunpack.c.h.b16 %v964
        %v1048 = vunpack.c.l.b16 %v965
        %v1049 = vunpack.c.l.b16 %v966
        %v1050 = vunpack.c.h.b16 %v966
        %v1051 = vunpack.c.l.b16 %v967
        %v1052 = vunpack.c.l.b16 %v968
        %v1053 = vunpack.c.h.b16 %v968
        %v1054 = vunpack.c.l.b16 %v969
        %v1055 = vunpack.c.l.b16 %v970
        %v1056 = vunpack.c.h.b16 %v970
        %v1057 = vunpack.c.l.b16 %v971
        %v1058 = vunpack.c.l.b16 %v972
        %v1059 = vunpack.c.h.b16 %v972
        %v1060 = vunpack.c.l.b16 %v973
        %v1061 = vunpack.c.l.b16 %v974
        %v1062 = vunpack.c.h.b16 %v974
        %v1063 = vunpack.c.l.b16 %v975
        %v1064 = vunpack.c.l.b16 %v976
        %v1065 = vunpack.c.h.b16 %v976
        %v1066 = vunpack.c.l.b16 %v977
        %v1067 = vunpack.c.l.b16 %v978
        %v1068 = vunpack.c.h.b16 %v978
        %v1069 = vunpack.c.l.b16 %v979
        %v1070 = vunpack.c.l.b16 %v980
        %v1071 = vunpack.c.h.b16 %v980
        %v1072 = vunpack.c.l.b16 %v981
        %v1073 = vunpack.c.l.b16 %v982
        %v1074 = vunpack.c.h.b16 %v982
        %v1075 = vunpack.c.l.b16 %v983
        %v1076 = vunpack.c.l.b16 %v984
        %v1077 = vunpack.c.h.b16 %v984
        %v1078 = vunpack.c.l.b16 %v985
        %v1079 = vunpack.c.l.b16 %v986
        %v1080 = vunpack.c.h.b16 %v986
        %v1081 = vunpack.c.l.b16 %v987
        %v1082 = vunpack.c.l.b16 %v988
        %v1083 = vunpack.c.h.b16 %v988
        %v1084 = vunpack.c.l.b16 %v989
        %v1085 = vunpack.c.l.b16 %v990
        %v1086 = vunpack.c.h.b16 %v990
        %v1087 = vunpack.c.l.b16 %v991
        %v1088 = vunpack.c.l.b16 %v992
        %v1089 = vunpack.c.h.b16 %v992
        %v1090 = vunpack.c.l.b16 %v993
        %v1091 = vunpack.c.l.b16 %v994
        %v1092 = vunpack.c.h.b16 %v994
        %v1093 = vunpack.c.l.b16 %v995
        %v1094 = vpack.c.b16 %v1049, %v1046
        %v1095 = vpack.c.b16 %v1050, %v1047
        %v1096 = vpack.c.b16 %v1051, %v1048
        %v1097 = vpack.c.b16 %v1055, %v1052
        %v1098 = vpack.c.b16 %v1056, %v1053
        %v1099 = vpack.c.b16 %v1057, %v1054
        %v1100 = vpack.c.b16 %v1061, %v1058
        %v1101 = vpack.c.b16 %v1062, %v1059
        %v1102 = vpack.c.b16 %v1063, %v1060
        %v1103 = vpack.c.b16 %v1067, %v1064
        %v1104 = vpack.c.b16 %v1068, %v1065
        %v1105 = vpack.c.b16 %v1069, %v1066
        %v1106 = vpack.c.b16 %v1073, %v1070
        %v1107 = vpack.c.b16 %v1074, %v1071
        %v1108 = vpack.c.b16 %v1075, %v1072
        %v1109 = vpack.c.b16 %v1079, %v1076
        %v1110 = vpack.c.b16 %v1080, %v1077
        %v1111 = vpack.c.b16 %v1081, %v1078
        %v1112 = vpack.c.b16 %v1085, %v1082
        %v1113 = vpack.c.b16 %v1086, %v1083
        %v1114 = vpack.c.b16 %v1087, %v1084
        %v1115 = vpack.c.b16 %v1091, %v1088
        %v1116 = vpack.c.b16 %v1092, %v1089
        %v1117 = vpack.c.b16 %v1093, %v1090
        %1142 = vmatprep.subr.bf16.mxu0 %v1095
        %1143 = vmatpush1.bf16.msra.mxu0 %v1094
        %1144 = vmatprep.subr.bf16.mxu0 %v1098
        %1145 = vmatpush1.bf16.msra.mxu0 %v1097
        %1146 = vmatprep.subr.bf16.mxu0 %v1101
        %1147 = vmatpush1.bf16.msra.mxu0 %v1100
        %1148 = vmatprep.subr.bf16.mxu0 %v1104
        %1149 = vmatpush1.bf16.msra.mxu0 %v1103
        %1150 = vmatprep.subr.bf16.mxu0 %v1107
        %1151 = vmatpush1.bf16.msra.mxu0 %v1106
        %1152 = vmatprep.subr.bf16.mxu0 %v1110
        %1153 = vmatpush1.bf16.msra.mxu0 %v1109
        %1154 = vmatprep.subr.bf16.mxu0 %v1113
        %1155 = vmatpush1.bf16.msra.mxu0 %v1112
        %1156 = vmatprep.subr.bf16.mxu0 %v1116
        %1157 = vmatpush1.bf16.msra.mxu0 %v1115
        %1158 = vmatprep.subr.bf16.mxu0 0
        %1159 = vmatpush1.bf16.msra.mxu0 0
        %1160 = vmatprep.subr.bf16.mxu0 0
        %1161 = vmatpush1.bf16.msra.mxu0 0
        %1162 = vmatprep.subr.bf16.mxu0 0
        %1163 = vmatpush1.bf16.msra.mxu0 0
        %1164 = vmatprep.subr.bf16.mxu0 0
        %1165 = vmatpush1.bf16.msra.mxu0 0
        %1166 = vmatprep.subr.bf16.mxu0 0
        %1167 = vmatpush1.bf16.msra.mxu0 0
        %1168 = vmatprep.subr.bf16.mxu0 0
        %1169 = vmatpush1.bf16.msra.mxu0 0
        %1170 = vmatprep.subr.bf16.mxu0 0
        %1171 = vmatpush1.bf16.msra.mxu0 0
        %1172 = vmatprep.subr.bf16.mxu0 0
        %1173 = vmatpush1.bf16.msra.mxu0 0
        %1174 = vmatprep.mubr.bf16.mxu0 0
        %1175 = vmatmul.mubr.bf16.gmra.mrb[0].mxu0 %v997
        %v1176 = vpop.f32.mrb[0].mxu0
        %v1177 = vadd.f32 %v1002, %v1176
        %v1178 = vpop.f32.mrb[0].mxu0
        %v1179 = vadd.f32 %v1006, %v1178
        %v1180 = vpop.f32.mrb[0].mxu0
        %v1181 = vadd.f32 %v1002, %v1180
        %v1182 = vpop.f32.mrb[0].mxu0
        %v1183 = vadd.f32 %v1006, %v1182
        %1184 = vdwg.mxu0
        %1185 = vmatprep.subr.bf16.mxu0 0
        %1186 = vmatpush1.bf16.msra.mxu0 %v1096
        %1187 = vmatprep.subr.bf16.mxu0 0
        %1188 = vmatpush1.bf16.msra.mxu0 %v1099
        %1189 = vmatprep.subr.bf16.mxu0 0
        %1190 = vmatpush1.bf16.msra.mxu0 %v1102
        %1191 = vmatprep.subr.bf16.mxu0 0
        %1192 = vmatpush1.bf16.msra.mxu0 %v1105
        %1193 = vmatprep.subr.bf16.mxu0 0
        %1194 = vmatpush1.bf16.msra.mxu0 %v1108
        %1195 = vmatprep.subr.bf16.mxu0 0
        %1196 = vmatpush1.bf16.msra.mxu0 %v1111
        %1197 = vmatprep.subr.bf16.mxu0 0
        %1198 = vmatpush1.bf16.msra.mxu0 %v1114
        %1199 = vmatprep.subr.bf16.mxu0 0
        %1200 = vmatpush1.bf16.msra.mxu0 %v1117
        %1201 = vmatprep.subr.bf16.mxu0 0
        %1202 = vmatpush1.bf16.msra.mxu0 0
        %1203 = vmatprep.subr.bf16.mxu0 0
        %1204 = vmatpush1.bf16.msra.mxu0 0
        %1205 = vmatprep.subr.bf16.mxu0 0
        %1206 = vmatpush1.bf16.msra.mxu0 0
        %1207 = vmatprep.subr.bf16.mxu0 0
        %1208 = vmatpush1.bf16.msra.mxu0 0
        %1209 = vmatprep.subr.bf16.mxu0 0
        %1210 = vmatpush1.bf16.msra.mxu0 0
        %1211 = vmatprep.subr.bf16.mxu0 0
        %1212 = vmatpush1.bf16.msra.mxu0 0
        %1213 = vmatprep.subr.bf16.mxu0 0
        %1214 = vmatpush1.bf16.msra.mxu0 0
        %1215 = vmatprep.subr.bf16.mxu0 0
        %1216 = vmatpush1.bf16.msra.mxu0 0
        %1217 = vmatprep.mubr.bf16.mxu0 0
        %1218 = vmatmul.mubr.bf16.gmra.mrb[0].mxu0 %v997
        %v1219 = vpop.f32.mrb[0].mxu0
        %v1220 = vadd.f32 %v1010, %v1219
        %v1221 = vpop.f32.mrb[0].mxu0
        %v1222 = vpop.f32.mrb[0].mxu0
        %v1223 = vadd.f32 %v1010, %v1222
        %v1224 = vpop.f32.mrb[0].mxu0
        %1225 = vdwg.mxu0
        %v1226 = vld [vmem:[%s3] sm:$0xff]
        %v1227 = vld [vmem:[%s3 + $0x8] sm:$0xff]
        %v1228 = vpack.c.bf16 %v1181, %v1177
        %v1229 = vpack.c.bf16 %v1183, %v1179
        %vm1230 = vcmask 523264
        %v1232 = vsel %vm1230, %v1228, 0
        %v1235 = vsel %vm1230, %v1229, 0
        %1237 = vmatprep.subr.bf16.mxu0 0
        %1238 = vmatpush1.bf16.xpose.msra.mxu0 %v1235
        %1239 = vmatprep.subr.bf16.mxu0 0
        %1240 = vmatpush1.bf16.xpose.msra.mxu0 0
        %1241 = vmatprep.subr.bf16.mxu0 0
        %1242 = vmatpush1.bf16.xpose.msra.mxu0 0
        %1243 = vmatprep.subr.bf16.mxu0 0
        %1244 = vmatpush1.bf16.xpose.msra.mxu0 0
        %1245 = vmatprep.subr.bf16.mxu0 0
        %1246 = vmatpush1.bf16.xpose.msra.mxu0 0
        %1247 = vmatprep.subr.bf16.mxu0 0
        %1248 = vmatpush1.bf16.xpose.msra.mxu0 0
        %1249 = vmatprep.subr.bf16.mxu0 0
        %1250 = vmatpush1.bf16.xpose.msra.mxu0 0
        %1251 = vmatprep.subr.bf16.mxu0 0
        %1252 = vmatpush1.bf16.xpose.msra.mxu0 0
        %1253 = vmatprep.subr.bf16.mxu0 0
        %1254 = vmatpush1.bf16.xpose.msra.mxu0 0
        %1255 = vmatprep.subr.bf16.mxu0 0
        %1256 = vmatpush1.bf16.xpose.msra.mxu0 0
        %1257 = vmatprep.subr.bf16.mxu0 0
        %1258 = vmatpush1.bf16.xpose.msra.mxu0 0
        %1259 = vmatprep.subr.bf16.mxu0 0
        %1260 = vmatpush1.bf16.xpose.msra.mxu0 0
        %1261 = vmatprep.subr.bf16.mxu0 0
        %1262 = vmatpush1.bf16.xpose.msra.mxu0 0
        %1263 = vmatprep.subr.bf16.mxu0 0
        %1264 = vmatpush1.bf16.xpose.msra.mxu0 0
        %1265 = vmatprep.subr.bf16.mxu0 0
        %1266 = vmatpush1.bf16.xpose.msra.mxu0 0
        %1267 = vmatprep.subr.bf16.mxu0 0
        %1268 = vmatpush1.bf16.xpose.msra.mxu0 0
        %1269 = vmatprep.mubr.bf16.mxu0 0
        %1270 = vmatmul.mubr.bf16.gmra.mrb[0].mxu0 %v1232
        %v1271 = vpop.f32.mrb[0].mxu0
        %v1272 = vadd.f32 0.0, %v1271
        %v1273 = vpop.f32.mrb[0].mxu0
        %v1274 = vpop.f32.mrb[0].mxu0
        %v1275 = vadd.f32 0.0, %v1274
        %v1276 = vpop.f32.mrb[0].mxu0
        %1277 = vdwg.mxu0
        %v1278 = vmul.f32 %v1272, 0.125
        %v1279 = vmul.f32 %v1275, 0.125
        %v1280 = vadd.f32 %v1278, %v1226
        %v1281 = vadd.f32 %v1279, %v1227
        %vm1282 = vcmask 130048
        %v1283 = vsel %vm1282, %v1280, -inf
        %1284 = vmax.xlane.f32.xlu0 %v1283
        %v1285 = vpop.xlane.xlu0 %1284
        %v1286 = vsel %vm1282, %v1281, -inf
        %1287 = vmax.xlane.f32.xlu0 %v1286
        %v1288 = vpop.xlane.xlu0 %1287
        %v1289 = vsub.f32 %v1280, %v1285
        %v1290 = vsub.f32 %v1281, %v1288
        %v1291 = vmul.f32 %v1289, 1.442695
        %v1292 = vpow.pop %v1291
        %v1293 = vmul.f32 %v1290, 1.442695
        %v1294 = vpow.pop %v1293
        %v1295 = vsel %vm1282, %v1292, 0.0
        %1296 = vadd.xlane.f32.xlu0 %v1295
        %v1297 = vpop.xlane.xlu0 %1296
        %v1298 = vsel %vm1282, %v1294, 0.0
        %1299 = vadd.xlane.f32.xlu0 %v1298
        %v1300 = vpop.xlane.xlu0 %1299
        %v1301 = vrcp.pop %v1297
        %v1302 = vrcp.pop %v1300
        %v1303 = vmul.f32 %v1292, %v1301
        %v1304 = vmul.f32 %v1294, %v1302
        %v1305 = vpack.c.bf16 %v1304, %v1303
        %v1306 = vpack.c.bf16 %v1223, %v1220
        %v1308 = vsel %vm1282, %v1305, 0
        %1310 = vmatprep.subr.bf16.mxu0 0
        %1311 = vmatpush1.bf16.msra.mxu0 %v1306
        %1312 = vmatprep.subr.bf16.mxu0 0
        %1313 = vmatpush1.bf16.msra.mxu0 0
        %1314 = vmatprep.subr.bf16.mxu0 0
        %1315 = vmatpush1.bf16.msra.mxu0 0
        %1316 = vmatprep.subr.bf16.mxu0 0
        %1317 = vmatpush1.bf16.msra.mxu0 0
        %1318 = vmatprep.subr.bf16.mxu0 0
        %1319 = vmatpush1.bf16.msra.mxu0 0
        %1320 = vmatprep.subr.bf16.mxu0 0
        %1321 = vmatpush1.bf16.msra.mxu0 0
        %1322 = vmatprep.subr.bf16.mxu0 0
        %1323 = vmatpush1.bf16.msra.mxu0 0
        %1324 = vmatprep.subr.bf16.mxu0 0
        %1325 = vmatpush1.bf16.msra.mxu0 0
        %1326 = vmatprep.subr.bf16.mxu0 0
        %1327 = vmatpush1.bf16.msra.mxu0 0
        %1328 = vmatprep.subr.bf16.mxu0 0
        %1329 = vmatpush1.bf16.msra.mxu0 0
        %1330 = vmatprep.subr.bf16.mxu0 0
        %1331 = vmatpush1.bf16.msra.mxu0 0
        %1332 = vmatprep.subr.bf16.mxu0 0
        %1333 = vmatpush1.bf16.msra.mxu0 0
        %1334 = vmatprep.subr.bf16.mxu0 0
        %1335 = vmatpush1.bf16.msra.mxu0 0
        %1336 = vmatprep.subr.bf16.mxu0 0
        %1337 = vmatpush1.bf16.msra.mxu0 0
        %1338 = vmatprep.subr.bf16.mxu0 0
        %1339 = vmatpush1.bf16.msra.mxu0 0
        %1340 = vmatprep.subr.bf16.mxu0 0
        %1341 = vmatpush1.bf16.msra.mxu0 0
        %1342 = vmatprep.mubr.bf16.mxu0 0
        %1343 = vmatmul.mubr.bf16.gmra.mrb[0].mxu0 %v1308
        %v1344 = vpop.f32.mrb[0].mxu0
        %v1345 = vadd.f32 0.0, %v1344
        %v1346 = vpop.f32.mrb[0].mxu0
        %v1347 = vpop.f32.mrb[0].mxu0
        %v1348 = vadd.f32 0.0, %v1347
        %v1349 = vpop.f32.mrb[0].mxu0
        %1350 = vdwg.mxu0
        %1352 = vrot.lane.b32.xlu0 %v1228, 64
        %v1353 = vpop.permute.xlu0 %1352
        %1355 = vrot.lane.b32.xlu0 %v1229, 64
        %v1356 = vpop.permute.xlu0 %1355
        %v1358 = vsel %vm1230, %v1353, 0
        %v1361 = vsel %vm1230, %v1356, 0
        %1363 = vmatprep.subr.bf16.mxu0 0
        %1364 = vmatpush1.bf16.xpose.msra.mxu0 %v1361
        %1365 = vmatprep.subr.bf16.mxu0 0
        %1366 = vmatpush1.bf16.xpose.msra.mxu0 0
        %1367 = vmatprep.subr.bf16.mxu0 0
        %1368 = vmatpush1.bf16.xpose.msra.mxu0 0
        %1369 = vmatprep.subr.bf16.mxu0 0
        %1370 = vmatpush1.bf16.xpose.msra.mxu0 0
        %1371 = vmatprep.subr.bf16.mxu0 0
        %1372 = vmatpush1.bf16.xpose.msra.mxu0 0
        %1373 = vmatprep.subr.bf16.mxu0 0
        %1374 = vmatpush1.bf16.xpose.msra.mxu0 0
        %1375 = vmatprep.subr.bf16.mxu0 0
        %1376 = vmatpush1.bf16.xpose.msra.mxu0 0
        %1377 = vmatprep.subr.bf16.mxu0 0
        %1378 = vmatpush1.bf16.xpose.msra.mxu0 0
        %1379 = vmatprep.subr.bf16.mxu0 0
        %1380 = vmatpush1.bf16.xpose.msra.mxu0 0
        %1381 = vmatprep.subr.bf16.mxu0 0
        %1382 = vmatpush1.bf16.xpose.msra.mxu0 0
        %1383 = vmatprep.subr.bf16.mxu0 0
        %1384 = vmatpush1.bf16.xpose.msra.mxu0 0
        %1385 = vmatprep.subr.bf16.mxu0 0
        %1386 = vmatpush1.bf16.xpose.msra.mxu0 0
        %1387 = vmatprep.subr.bf16.mxu0 0
        %1388 = vmatpush1.bf16.xpose.msra.mxu0 0
        %1389 = vmatprep.subr.bf16.mxu0 0
        %1390 = vmatpush1.bf16.xpose.msra.mxu0 0
        %1391 = vmatprep.subr.bf16.mxu0 0
        %1392 = vmatpush1.bf16.xpose.msra.mxu0 0
        %1393 = vmatprep.subr.bf16.mxu0 0
        %1394 = vmatpush1.bf16.xpose.msra.mxu0 0
        %1395 = vmatprep.mubr.bf16.mxu0 0
        %1396 = vmatmul.mubr.bf16.gmra.mrb[0].mxu0 %v1358
        %v1397 = vpop.f32.mrb[0].mxu0
        %v1398 = vadd.f32 0.0, %v1397
        %v1399 = vpop.f32.mrb[0].mxu0
        %v1400 = vpop.f32.mrb[0].mxu0
        %v1401 = vadd.f32 0.0, %v1400
        %v1402 = vpop.f32.mrb[0].mxu0
        %1403 = vdwg.mxu0
        %v1404 = vmul.f32 %v1398, 0.125
        %v1405 = vmul.f32 %v1401, 0.125
        %v1406 = vadd.f32 %v1404, %v1226
        %v1407 = vadd.f32 %v1405, %v1227
        %v1408 = vsel %vm1282, %v1406, -inf
        %1409 = vmax.xlane.f32.xlu0 %v1408
        %v1410 = vpop.xlane.xlu0 %1409
        %v1411 = vsel %vm1282, %v1407, -inf
        %1412 = vmax.xlane.f32.xlu0 %v1411
        %v1413 = vpop.xlane.xlu0 %1412
        %v1414 = vsub.f32 %v1406, %v1410
        %v1415 = vsub.f32 %v1407, %v1413
        %v1416 = vmul.f32 %v1414, 1.442695
        %v1417 = vpow.pop %v1416
        %v1418 = vmul.f32 %v1415, 1.442695
        %v1419 = vpow.pop %v1418
        %v1420 = vsel %vm1282, %v1417, 0.0
        %1421 = vadd.xlane.f32.xlu0 %v1420
        %v1422 = vpop.xlane.xlu0 %1421
        %v1423 = vsel %vm1282, %v1419, 0.0
        %1424 = vadd.xlane.f32.xlu0 %v1423
        %v1425 = vpop.xlane.xlu0 %1424
        %v1426 = vrcp.pop %v1422
        %v1427 = vrcp.pop %v1425
        %v1428 = vmul.f32 %v1417, %v1426
        %v1429 = vmul.f32 %v1419, %v1427
        %v1430 = vpack.c.bf16 %v1429, %v1428
        %1432 = vrot.lane.b32.xlu0 %v1306, 64
        %v1433 = vpop.permute.xlu0 %1432
        %v1436 = vsel %vm1282, %v1430, 0
        %1438 = vmatprep.subr.bf16.mxu0 0
        %1439 = vmatpush1.bf16.msra.mxu0 %v1433
        %1440 = vmatprep.subr.bf16.mxu0 0
        %1441 = vmatpush1.bf16.msra.mxu0 0
        %1442 = vmatprep.subr.bf16.mxu0 0
        %1443 = vmatpush1.bf16.msra.mxu0 0
        %1444 = vmatprep.subr.bf16.mxu0 0
        %1445 = vmatpush1.bf16.msra.mxu0 0
        %1446 = vmatprep.subr.bf16.mxu0 0
        %1447 = vmatpush1.bf16.msra.mxu0 0
        %1448 = vmatprep.subr.bf16.mxu0 0
        %1449 = vmatpush1.bf16.msra.mxu0 0
        %1450 = vmatprep.subr.bf16.mxu0 0
        %1451 = vmatpush1.bf16.msra.mxu0 0
        %1452 = vmatprep.subr.bf16.mxu0 0
        %1453 = vmatpush1.bf16.msra.mxu0 0
        %1454 = vmatprep.subr.bf16.mxu0 0
        %1455 = vmatpush1.bf16.msra.mxu0 0
        %1456 = vmatprep.subr.bf16.mxu0 0
        %1457 = vmatpush1.bf16.msra.mxu0 0
        %1458 = vmatprep.subr.bf16.mxu0 0
        %1459 = vmatpush1.bf16.msra.mxu0 0
        %1460 = vmatprep.subr.bf16.mxu0 0
        %1461 = vmatpush1.bf16.msra.mxu0 0
        %1462 = vmatprep.subr.bf16.mxu0 0
        %1463 = vmatpush1.bf16.msra.mxu0 0
        %1464 = vmatprep.subr.bf16.mxu0 0
        %1465 = vmatpush1.bf16.msra.mxu0 0
        %1466 = vmatprep.subr.bf16.mxu0 0
        %1467 = vmatpush1.bf16.msra.mxu0 0
        %1468 = vmatprep.subr.bf16.mxu0 0
        %1469 = vmatpush1.bf16.msra.mxu0 0
        %1470 = vmatprep.mubr.bf16.mxu0 0
        %1471 = vmatmul.mubr.bf16.gmra.mrb[0].mxu0 %v1436
        %v1472 = vpop.f32.mrb[0].mxu0
        %v1473 = vadd.f32 0.0, %v1472
        %v1474 = vpop.f32.mrb[0].mxu0
        %v1475 = vpop.f32.mrb[0].mxu0
        %v1476 = vadd.f32 0.0, %v1475
        %v1477 = vpop.f32.mrb[0].mxu0
        %1478 = vdwg.mxu0
        %1481 = vrot.lane.b32.xlu0 %v1473, 64
        %v1482 = vpop.permute.xlu0 %1481
        %1483 = vrot.lane.b32.xlu0 %v1476, 64
        %v1484 = vpop.permute.xlu0 %1483
        %v1487 = vsel %vm1230, %v1345, %v1482
        %v1488 = vsel %vm1230, %v1348, %v1484
        %v1489 = vld [vmem:[%s742] sm:$0xf]
        %v1490 = vld [vmem:[%s742 + $0x4] sm:$0xf]
        %v1491 = vld [vmem:[%s742 + $0x8] sm:$0xf]
        %v1492 = vld [vmem:[%s742 + $0xc] sm:$0xf]
        %v1493 = vld [vmem:[%s742 + $0x10] sm:$0xf]
        %v1494 = vld [vmem:[%s742 + $0x14] sm:$0xf]
        %v1495 = vld [vmem:[%s742 + $0x18] sm:$0xf]
        %v1496 = vld [vmem:[%s742 + $0x1c] sm:$0xf]
        %v1497 = vld [vmem:[%s742 + $0x20] sm:$0xf]
        %v1498 = vld [vmem:[%s742 + $0x24] sm:$0xf]
        %v1499 = vld [vmem:[%s742 + $0x28] sm:$0xf]
        %v1500 = vld [vmem:[%s742 + $0x2c] sm:$0xf]
        %v1501 = vld [vmem:[%s742 + $0x30] sm:$0xf]
        %v1502 = vld [vmem:[%s742 + $0x34] sm:$0xf]
        %v1503 = vld [vmem:[%s742 + $0x38] sm:$0xf]
        %v1504 = vld [vmem:[%s742 + $0x3c] sm:$0xf]
        %v1505 = vld [vmem:[%s904] sm:$0x1]
        %v1506 = vpack.c.bf16 %v1488, %v1487
        %v1508 = vlaneseq
        %v1509 = vshrl.u32 %v1508, 7
        %v1510 = vsub.s32 0, %v1509
        %v1511 = vrot.slane %v1505, %v1510
        %v1529 = vunpack.c.l.b16 %v1489
        %v1530 = vunpack.c.l.b16 %v1490
        %v1531 = vunpack.c.l.b16 %v1491
        %v1532 = vunpack.c.l.b16 %v1492
        %v1533 = vunpack.c.l.b16 %v1493
        %v1534 = vunpack.c.l.b16 %v1494
        %v1535 = vunpack.c.l.b16 %v1495
        %v1536 = vunpack.c.l.b16 %v1496
        %v1537 = vunpack.c.l.b16 %v1497
        %v1538 = vunpack.c.l.b16 %v1498
        %v1539 = vunpack.c.l.b16 %v1499
        %v1540 = vunpack.c.l.b16 %v1500
        %v1541 = vunpack.c.l.b16 %v1501
        %v1542 = vunpack.c.l.b16 %v1502
        %v1543 = vunpack.c.l.b16 %v1503
        %v1544 = vunpack.c.l.b16 %v1504
        %v1545 = vpack.c.b16 %v1530, %v1529
        %v1546 = vpack.c.b16 %v1532, %v1531
        %v1547 = vpack.c.b16 %v1534, %v1533
        %v1548 = vpack.c.b16 %v1536, %v1535
        %v1549 = vpack.c.b16 %v1538, %v1537
        %v1550 = vpack.c.b16 %v1540, %v1539
        %v1551 = vpack.c.b16 %v1542, %v1541
        %v1552 = vpack.c.b16 %v1544, %v1543
        %1561 = vmatprep.subr.bf16.mxu0 0
        %1562 = vmatpush1.bf16.msra.mxu0 %v1545
        %1563 = vmatprep.subr.bf16.mxu0 0
        %1564 = vmatpush1.bf16.msra.mxu0 %v1546
        %1565 = vmatprep.subr.bf16.mxu0 0
        %1566 = vmatpush1.bf16.msra.mxu0 %v1547
        %1567 = vmatprep.subr.bf16.mxu0 0
        %1568 = vmatpush1.bf16.msra.mxu0 %v1548
        %1569 = vmatprep.subr.bf16.mxu0 0
        %1570 = vmatpush1.bf16.msra.mxu0 %v1549
        %1571 = vmatprep.subr.bf16.mxu0 0
        %1572 = vmatpush1.bf16.msra.mxu0 %v1550
        %1573 = vmatprep.subr.bf16.mxu0 0
        %1574 = vmatpush1.bf16.msra.mxu0 %v1551
        %1575 = vmatprep.subr.bf16.mxu0 0
        %1576 = vmatpush1.bf16.msra.mxu0 %v1552
        %1577 = vmatprep.subr.bf16.mxu0 0
        %1578 = vmatpush1.bf16.msra.mxu0 0
        %1579 = vmatprep.subr.bf16.mxu0 0
        %1580 = vmatpush1.bf16.msra.mxu0 0
        %1581 = vmatprep.subr.bf16.mxu0 0
        %1582 = vmatpush1.bf16.msra.mxu0 0
        %1583 = vmatprep.subr.bf16.mxu0 0
        %1584 = vmatpush1.bf16.msra.mxu0 0
        %1585 = vmatprep.subr.bf16.mxu0 0
        %1586 = vmatpush1.bf16.msra.mxu0 0
        %1587 = vmatprep.subr.bf16.mxu0 0
        %1588 = vmatpush1.bf16.msra.mxu0 0
        %1589 = vmatprep.subr.bf16.mxu0 0
        %1590 = vmatpush1.bf16.msra.mxu0 0
        %1591 = vmatprep.subr.bf16.mxu0 0
        %1592 = vmatpush1.bf16.msra.mxu0 0
        %1593 = vmatprep.mubr.bf16.mxu0 0
        %1594 = vmatmul.mubr.bf16.gmra.mrb[0].mxu0 %v1506
        %v1595 = vpop.f32.mrb[0].mxu0
        %v1596 = vadd.f32 %v1511, %v1595
        %v1597 = vpop.f32.mrb[0].mxu0
        %v1598 = vpop.f32.mrb[0].mxu0
        %v1599 = vadd.f32 %v1511, %v1598
        %v1600 = vpop.f32.mrb[0].mxu0
        %1601 = vdwg.mxu0
        %v1602 = vadd.f32 %v962, %v1596
        %v1603 = vadd.f32 %v963, %v1599
        %v1604 = vld [vmem:[%s750] sm:$0x1]
        %v1605 = vld [vmem:[%s758] sm:$0x1]
        %1606 = vadd.xlane.f32.xlu0 %v1602
        %v1607 = vpop.xlane.xlu0 %1606
        %1608 = vadd.xlane.f32.xlu0 %v1603
        %v1609 = vpop.xlane.xlu0 %1608
        %v1610 = vrcp.pop 128.0
        %v1611 = vmul.f32 %v1607, %v1610
        %v1612 = vmul.f32 %v1609, %v1610
        %v1613 = vsub.f32 %v1602, %v1611
        %v1614 = vsub.f32 %v1603, %v1612
        %v1615 = vmul.f32 %v1613, %v1613
        %v1616 = vmul.f32 %v1614, %v1614
        %1617 = vadd.xlane.f32.xlu0 %v1615
        %v1618 = vpop.xlane.xlu0 %1617
        %1619 = vadd.xlane.f32.xlu0 %v1616
        %v1620 = vpop.xlane.xlu0 %1619
        %v1621 = vmul.f32 %v1618, %v1610
        %v1622 = vmul.f32 %v1620, %v1610
        %v1623 = vadd.f32 %v1621, 1e-05
        %v1624 = vadd.f32 %v1622, 1e-05
        %v1625 = vrsqrt.pop %v1623
        %v1626 = vrsqrt.pop %v1624
        %v1627 = vmul.f32 %v1613, %v1625
        %v1628 = vmul.f32 %v1614, %v1626
        %v1630 = vlaneseq
        %v1631 = vshrl.u32 %v1630, 7
        %v1632 = vsub.s32 0, %v1631
        %v1633 = vrot.slane %v1604, %v1632
        %v1635 = vmul.f32 %v1627, %v1633
        %v1636 = vmul.f32 %v1628, %v1633
        %v1638 = vlaneseq
        %v1639 = vshrl.u32 %v1638, 7
        %v1640 = vsub.s32 0, %v1639
        %v1641 = vrot.slane %v1605, %v1640
        %v1643 = vadd.f32 %v1635, %v1641
        %v1644 = vadd.f32 %v1636, %v1641
        %v1645 = vld [vmem:[%s767] sm:$0xff]
        %v1646 = vld [vmem:[%s767 + $0x8] sm:$0xff]
        %v1647 = vld [vmem:[%s767 + $0x10] sm:$0xff]
        %v1648 = vld [vmem:[%s767 + $0x18] sm:$0xff]
        %v1649 = vld [vmem:[%s767 + $0x20] sm:$0xff]
        %v1650 = vld [vmem:[%s767 + $0x28] sm:$0xff]
        %v1651 = vld [vmem:[%s767 + $0x30] sm:$0xff]
        %v1652 = vld [vmem:[%s767 + $0x38] sm:$0xff]
        %v1653 = vld [vmem:[%s767 + $0x40] sm:$0xff]
        %v1654 = vld [vmem:[%s767 + $0x48] sm:$0xff]
        %v1655 = vld [vmem:[%s767 + $0x50] sm:$0xff]
        %v1656 = vld [vmem:[%s767 + $0x58] sm:$0xff]
        %v1657 = vld [vmem:[%s767 + $0x60] sm:$0xff]
        %v1658 = vld [vmem:[%s767 + $0x68] sm:$0xff]
        %v1659 = vld [vmem:[%s767 + $0x70] sm:$0xff]
        %v1660 = vld [vmem:[%s767 + $0x78] sm:$0xff]
        %v1661 = vld [vmem:[%s767 + $0x80] sm:$0xff]
        %v1662 = vld [vmem:[%s767 + $0x88] sm:$0xff]
        %v1663 = vld [vmem:[%s767 + $0x90] sm:$0xff]
        %v1664 = vld [vmem:[%s767 + $0x98] sm:$0xff]
        %v1665 = vld [vmem:[%s767 + $0xa0] sm:$0xff]
        %v1666 = vld [vmem:[%s767 + $0xa8] sm:$0xff]
        %v1667 = vld [vmem:[%s767 + $0xb0] sm:$0xff]
        %v1668 = vld [vmem:[%s767 + $0xb8] sm:$0xff]
        %v1669 = vld [vmem:[%s767 + $0xc0] sm:$0xff]
        %v1670 = vld [vmem:[%s767 + $0xc8] sm:$0xff]
        %v1671 = vld [vmem:[%s767 + $0xd0] sm:$0xff]
        %v1672 = vld [vmem:[%s767 + $0xd8] sm:$0xff]
        %v1673 = vld [vmem:[%s767 + $0xe0] sm:$0xff]
        %v1674 = vld [vmem:[%s767 + $0xe8] sm:$0xff]
        %v1675 = vld [vmem:[%s767 + $0xf0] sm:$0xff]
        %v1676 = vld [vmem:[%s767 + $0xf8] sm:$0xff]
        %v1677 = vld [vmem:[%s908] sm:$0xf]
        %v1678 = vpack.c.bf16 %v1644, %v1643
        %v1680 = vlaneseq
        %v1681 = vshrl.u32 %v1680, 7
        %v1682 = vsub.s32 0, %v1681
        %v1683 = vrot.slane %v1677, %v1682
        %v1684 = vlaneseq
        %v1685 = vshrl.u32 %v1684, 7
        %v1686 = vsub.s32 1, %v1685
        %v1687 = vrot.slane %v1677, %v1686
        %v1688 = vlaneseq
        %v1689 = vshrl.u32 %v1688, 7
        %v1690 = vsub.s32 2, %v1689
        %v1691 = vrot.slane %v1677, %v1690
        %v1692 = vlaneseq
        %v1693 = vshrl.u32 %v1692, 7
        %v1694 = vsub.s32 3, %v1693
        %v1695 = vrot.slane %v1677, %v1694
        %v1732 = vunpack.c.l.b16 %v1645
        %v1733 = vunpack.c.h.b16 %v1645
        %v1734 = vunpack.c.l.b16 %v1646
        %v1735 = vunpack.c.h.b16 %v1646
        %v1736 = vunpack.c.l.b16 %v1647
        %v1737 = vunpack.c.h.b16 %v1647
        %v1738 = vunpack.c.l.b16 %v1648
        %v1739 = vunpack.c.h.b16 %v1648
        %v1740 = vunpack.c.l.b16 %v1649
        %v1741 = vunpack.c.h.b16 %v1649
        %v1742 = vunpack.c.l.b16 %v1650
        %v1743 = vunpack.c.h.b16 %v1650
        %v1744 = vunpack.c.l.b16 %v1651
        %v1745 = vunpack.c.h.b16 %v1651
        %v1746 = vunpack.c.l.b16 %v1652
        %v1747 = vunpack.c.h.b16 %v1652
        %v1748 = vunpack.c.l.b16 %v1653
        %v1749 = vunpack.c.h.b16 %v1653
        %v1750 = vunpack.c.l.b16 %v1654
        %v1751 = vunpack.c.h.b16 %v1654
        %v1752 = vunpack.c.l.b16 %v1655
        %v1753 = vunpack.c.h.b16 %v1655
        %v1754 = vunpack.c.l.b16 %v1656
        %v1755 = vunpack.c.h.b16 %v1656
        %v1756 = vunpack.c.l.b16 %v1657
        %v1757 = vunpack.c.h.b16 %v1657
        %v1758 = vunpack.c.l.b16 %v1658
        %v1759 = vunpack.c.h.b16 %v1658
        %v1760 = vunpack.c.l.b16 %v1659
        %v1761 = vunpack.c.h.b16 %v1659
        %v1762 = vunpack.c.l.b16 %v1660
        %v1763 = vunpack.c.h.b16 %v1660
        %v1764 = vunpack.c.l.b16 %v1661
        %v1765 = vunpack.c.h.b16 %v1661
        %v1766 = vunpack.c.l.b16 %v1662
        %v1767 = vunpack.c.h.b16 %v1662
        %v1768 = vunpack.c.l.b16 %v1663
        %v1769 = vunpack.c.h.b16 %v1663
        %v1770 = vunpack.c.l.b16 %v1664
        %v1771 = vunpack.c.h.b16 %v1664
        %v1772 = vunpack.c.l.b16 %v1665
        %v1773 = vunpack.c.h.b16 %v1665
        %v1774 = vunpack.c.l.b16 %v1666
        %v1775 = vunpack.c.h.b16 %v1666
        %v1776 = vunpack.c.l.b16 %v1667
        %v1777 = vunpack.c.h.b16 %v1667
        %v1778 = vunpack.c.l.b16 %v1668
        %v1779 = vunpack.c.h.b16 %v1668
        %v1780 = vunpack.c.l.b16 %v1669
        %v1781 = vunpack.c.h.b16 %v1669
        %v1782 = vunpack.c.l.b16 %v1670
        %v1783 = vunpack.c.h.b16 %v1670
        %v1784 = vunpack.c.l.b16 %v1671
        %v1785 = vunpack.c.h.b16 %v1671
        %v1786 = vunpack.c.l.b16 %v1672
        %v1787 = vunpack.c.h.b16 %v1672
        %v1788 = vunpack.c.l.b16 %v1673
        %v1789 = vunpack.c.h.b16 %v1673
        %v1790 = vunpack.c.l.b16 %v1674
        %v1791 = vunpack.c.h.b16 %v1674
        %v1792 = vunpack.c.l.b16 %v1675
        %v1793 = vunpack.c.h.b16 %v1675
        %v1794 = vunpack.c.l.b16 %v1676
        %v1795 = vunpack.c.h.b16 %v1676
        %v1796 = vpack.c.b16 %v1736, %v1732
        %v1797 = vpack.c.b16 %v1737, %v1733
        %v1798 = vpack.c.b16 %v1738, %v1734
        %v1799 = vpack.c.b16 %v1739, %v1735
        %v1800 = vpack.c.b16 %v1744, %v1740
        %v1801 = vpack.c.b16 %v1745, %v1741
        %v1802 = vpack.c.b16 %v1746, %v1742
        %v1803 = vpack.c.b16 %v1747, %v1743
        %v1804 = vpack.c.b16 %v1752, %v1748
        %v1805 = vpack.c.b16 %v1753, %v1749
        %v1806 = vpack.c.b16 %v1754, %v1750
        %v1807 = vpack.c.b16 %v1755, %v1751
        %v1808 = vpack.c.b16 %v1760, %v1756
        %v1809 = vpack.c.b16 %v1761, %v1757
        %v1810 = vpack.c.b16 %v1762, %v1758
        %v1811 = vpack.c.b16 %v1763, %v1759
        %v1812 = vpack.c.b16 %v1768, %v1764
        %v1813 = vpack.c.b16 %v1769, %v1765
        %v1814 = vpack.c.b16 %v1770, %v1766
        %v1815 = vpack.c.b16 %v1771, %v1767
        %v1816 = vpack.c.b16 %v1776, %v1772
        %v1817 = vpack.c.b16 %v1777, %v1773
        %v1818 = vpack.c.b16 %v1778, %v1774
        %v1819 = vpack.c.b16 %v1779, %v1775
        %v1820 = vpack.c.b16 %v1784, %v1780
        %v1821 = vpack.c.b16 %v1785, %v1781
        %v1822 = vpack.c.b16 %v1786, %v1782
        %v1823 = vpack.c.b16 %v1787, %v1783
        %v1824 = vpack.c.b16 %v1792, %v1788
        %v1825 = vpack.c.b16 %v1793, %v1789
        %v1826 = vpack.c.b16 %v1794, %v1790
        %v1827 = vpack.c.b16 %v1795, %v1791
        %1860 = vmatprep.subr.bf16.mxu0 %v1797
        %1861 = vmatpush1.bf16.msra.mxu0 %v1796
        %1862 = vmatprep.subr.bf16.mxu0 %v1801
        %1863 = vmatpush1.bf16.msra.mxu0 %v1800
        %1864 = vmatprep.subr.bf16.mxu0 %v1805
        %1865 = vmatpush1.bf16.msra.mxu0 %v1804
        %1866 = vmatprep.subr.bf16.mxu0 %v1809
        %1867 = vmatpush1.bf16.msra.mxu0 %v1808
        %1868 = vmatprep.subr.bf16.mxu0 %v1813
        %1869 = vmatpush1.bf16.msra.mxu0 %v1812
        %1870 = vmatprep.subr.bf16.mxu0 %v1817
        %1871 = vmatpush1.bf16.msra.mxu0 %v1816
        %1872 = vmatprep.subr.bf16.mxu0 %v1821
        %1873 = vmatpush1.bf16.msra.mxu0 %v1820
        %1874 = vmatprep.subr.bf16.mxu0 %v1825
        %1875 = vmatpush1.bf16.msra.mxu0 %v1824
        %1876 = vmatprep.subr.bf16.mxu0 0
        %1877 = vmatpush1.bf16.msra.mxu0 0
        %1878 = vmatprep.subr.bf16.mxu0 0
        %1879 = vmatpush1.bf16.msra.mxu0 0
        %1880 = vmatprep.subr.bf16.mxu0 0
        %1881 = vmatpush1.bf16.msra.mxu0 0
        %1882 = vmatprep.subr.bf16.mxu0 0
        %1883 = vmatpush1.bf16.msra.mxu0 0
        %1884 = vmatprep.subr.bf16.mxu0 0
        %1885 = vmatpush1.bf16.msra.mxu0 0
        %1886 = vmatprep.subr.bf16.mxu0 0
        %1887 = vmatpush1.bf16.msra.mxu0 0
        %1888 = vmatprep.subr.bf16.mxu0 0
        %1889 = vmatpush1.bf16.msra.mxu0 0
        %1890 = vmatprep.subr.bf16.mxu0 0
        %1891 = vmatpush1.bf16.msra.mxu0 0
        %1892 = vmatprep.mubr.bf16.mxu0 0
        %1893 = vmatmul.mubr.bf16.gmra.mrb[0].mxu0 %v1678
        %v1894 = vpop.f32.mrb[0].mxu0
        %v1895 = vadd.f32 %v1683, %v1894
        %v1896 = vpop.f32.mrb[0].mxu0
        %v1897 = vadd.f32 %v1687, %v1896
        %v1898 = vpop.f32.mrb[0].mxu0
        %v1899 = vadd.f32 %v1683, %v1898
        %v1900 = vpop.f32.mrb[0].mxu0
        %v1901 = vadd.f32 %v1687, %v1900
        %1902 = vdwg.mxu0
        %1903 = vmatprep.subr.bf16.mxu0 %v1799
        %1904 = vmatpush1.bf16.msra.mxu0 %v1798
        %1905 = vmatprep.subr.bf16.mxu0 %v1803
        %1906 = vmatpush1.bf16.msra.mxu0 %v1802
        %1907 = vmatprep.subr.bf16.mxu0 %v1807
        %1908 = vmatpush1.bf16.msra.mxu0 %v1806
        %1909 = vmatprep.subr.bf16.mxu0 %v1811
        %1910 = vmatpush1.bf16.msra.mxu0 %v1810
        %1911 = vmatprep.subr.bf16.mxu0 %v1815
        %1912 = vmatpush1.bf16.msra.mxu0 %v1814
        %1913 = vmatprep.subr.bf16.mxu0 %v1819
        %1914 = vmatpush1.bf16.msra.mxu0 %v1818
        %1915 = vmatprep.subr.bf16.mxu0 %v1823
        %1916 = vmatpush1.bf16.msra.mxu0 %v1822
        %1917 = vmatprep.subr.bf16.mxu0 %v1827
        %1918 = vmatpush1.bf16.msra.mxu0 %v1826
        %1919 = vmatprep.subr.bf16.mxu0 0
        %1920 = vmatpush1.bf16.msra.mxu0 0
        %1921 = vmatprep.subr.bf16.mxu0 0
        %1922 = vmatpush1.bf16.msra.mxu0 0
        %1923 = vmatprep.subr.bf16.mxu0 0
        %1924 = vmatpush1.bf16.msra.mxu0 0
        %1925 = vmatprep.subr.bf16.mxu0 0
        %1926 = vmatpush1.bf16.msra.mxu0 0
        %1927 = vmatprep.subr.bf16.mxu0 0
        %1928 = vmatpush1.bf16.msra.mxu0 0
        %1929 = vmatprep.subr.bf16.mxu0 0
        %1930 = vmatpush1.bf16.msra.mxu0 0
        %1931 = vmatprep.subr.bf16.mxu0 0
        %1932 = vmatpush1.bf16.msra.mxu0 0
        %1933 = vmatprep.subr.bf16.mxu0 0
        %1934 = vmatpush1.bf16.msra.mxu0 0
        %1935 = vmatprep.mubr.bf16.mxu0 0
        %1936 = vmatmul.mubr.bf16.gmra.mrb[0].mxu0 %v1678
        %v1937 = vpop.f32.mrb[0].mxu0
        %v1938 = vadd.f32 %v1691, %v1937
        %v1939 = vpop.f32.mrb[0].mxu0
        %v1940 = vadd.f32 %v1695, %v1939
        %v1941 = vpop.f32.mrb[0].mxu0
        %v1942 = vadd.f32 %v1691, %v1941
        %v1943 = vpop.f32.mrb[0].mxu0
        %v1944 = vadd.f32 %v1695, %v1943
        %1945 = vdwg.mxu0
        %v1946 = vmul.f32 %v1895, %v1895
        %v1947 = vmul.f32 %v1897, %v1897
        %v1948 = vmul.f32 %v1938, %v1938
        %v1949 = vmul.f32 %v1940, %v1940
        %v1950 = vmul.f32 %v1899, %v1899
        %v1951 = vmul.f32 %v1901, %v1901
        %v1952 = vmul.f32 %v1942, %v1942
        %v1953 = vmul.f32 %v1944, %v1944
        %v1954 = vmul.f32 %v1895, %v1946
        %v1955 = vmul.f32 %v1897, %v1947
        %v1956 = vmul.f32 %v1938, %v1948
        %v1957 = vmul.f32 %v1940, %v1949
        %v1958 = vmul.f32 %v1899, %v1950
        %v1959 = vmul.f32 %v1901, %v1951
        %v1960 = vmul.f32 %v1942, %v1952
        %v1961 = vmul.f32 %v1944, %v1953
        %v1962 = vmul.f32 %v1954, 0.044715
        %v1963 = vmul.f32 %v1955, 0.044715
        %v1964 = vmul.f32 %v1956, 0.044715
        %v1965 = vmul.f32 %v1957, 0.044715
        %v1966 = vmul.f32 %v1958, 0.044715
        %v1967 = vmul.f32 %v1959, 0.044715
        %v1968 = vmul.f32 %v1960, 0.044715
        %v1969 = vmul.f32 %v1961, 0.044715
        %v1970 = vadd.f32 %v1895, %v1962
        %v1971 = vadd.f32 %v1897, %v1963
        %v1972 = vadd.f32 %v1938, %v1964
        %v1973 = vadd.f32 %v1940, %v1965
        %v1974 = vadd.f32 %v1899, %v1966
        %v1975 = vadd.f32 %v1901, %v1967
        %v1976 = vadd.f32 %v1942, %v1968
        %v1977 = vadd.f32 %v1944, %v1969
        %v1978 = vmul.f32 %v1970, 0.7978846
        %v1979 = vmul.f32 %v1971, 0.7978846
        %v1980 = vmul.f32 %v1972, 0.7978846
        %v1981 = vmul.f32 %v1973, 0.7978846
        %v1982 = vmul.f32 %v1974, 0.7978846
        %v1983 = vmul.f32 %v1975, 0.7978846
        %v1984 = vmul.f32 %v1976, 0.7978846
        %v1985 = vmul.f32 %v1977, 0.7978846
        %v1986 = vtanh.pop %v1978
        %v1987 = vtanh.pop %v1979
        %v1988 = vtanh.pop %v1980
        %v1989 = vtanh.pop %v1981
        %v1990 = vtanh.pop %v1982
        %v1991 = vtanh.pop %v1983
        %v1992 = vtanh.pop %v1984
        %v1993 = vtanh.pop %v1985
        %v1994 = vadd.f32 %v1986, 1.0
        %v1995 = vadd.f32 %v1987, 1.0
        %v1996 = vadd.f32 %v1988, 1.0
        %v1997 = vadd.f32 %v1989, 1.0
        %v1998 = vadd.f32 %v1990, 1.0
        %v1999 = vadd.f32 %v1991, 1.0
        %v2000 = vadd.f32 %v1992, 1.0
        %v2001 = vadd.f32 %v1993, 1.0
        %v2002 = vmul.f32 %v1994, 0.5
        %v2003 = vmul.f32 %v1995, 0.5
        %v2004 = vmul.f32 %v1996, 0.5
        %v2005 = vmul.f32 %v1997, 0.5
        %v2006 = vmul.f32 %v1998, 0.5
        %v2007 = vmul.f32 %v1999, 0.5
        %v2008 = vmul.f32 %v2000, 0.5
        %v2009 = vmul.f32 %v2001, 0.5
        %v2010 = vmul.f32 %v1895, %v2002
        %v2011 = vmul.f32 %v1897, %v2003
        %v2012 = vmul.f32 %v1938, %v2004
        %v2013 = vmul.f32 %v1940, %v2005
        %v2014 = vmul.f32 %v1899, %v2006
        %v2015 = vmul.f32 %v1901, %v2007
        %v2016 = vmul.f32 %v1942, %v2008
        %v2017 = vmul.f32 %v1944, %v2009
        %v2018 = vld [vmem:[%s776] sm:$0xf]
        %v2019 = vld [vmem:[%s776 + $0x4] sm:$0xf]
        %v2020 = vld [vmem:[%s776 + $0x8] sm:$0xf]
        %v2021 = vld [vmem:[%s776 + $0xc] sm:$0xf]
        %v2022 = vld [vmem:[%s776 + $0x10] sm:$0xf]
        %v2023 = vld [vmem:[%s776 + $0x14] sm:$0xf]
        %v2024 = vld [vmem:[%s776 + $0x18] sm:$0xf]
        %v2025 = vld [vmem:[%s776 + $0x1c] sm:$0xf]
        %v2026 = vld [vmem:[%s776 + $0x20] sm:$0xf]
        %v2027 = vld [vmem:[%s776 + $0x24] sm:$0xf]
        %v2028 = vld [vmem:[%s776 + $0x28] sm:$0xf]
        %v2029 = vld [vmem:[%s776 + $0x2c] sm:$0xf]
        %v2030 = vld [vmem:[%s776 + $0x30] sm:$0xf]
        %v2031 = vld [vmem:[%s776 + $0x34] sm:$0xf]
        %v2032 = vld [vmem:[%s776 + $0x38] sm:$0xf]
        %v2033 = vld [vmem:[%s776 + $0x3c] sm:$0xf]
        %v2034 = vld [vmem:[%s776 + $0x40] sm:$0xf]
        %v2035 = vld [vmem:[%s776 + $0x44] sm:$0xf]
        %v2036 = vld [vmem:[%s776 + $0x48] sm:$0xf]
        %v2037 = vld [vmem:[%s776 + $0x4c] sm:$0xf]
        %v2038 = vld [vmem:[%s776 + $0x50] sm:$0xf]
        %v2039 = vld [vmem:[%s776 + $0x54] sm:$0xf]
        %v2040 = vld [vmem:[%s776 + $0x58] sm:$0xf]
        %v2041 = vld [vmem:[%s776 + $0x5c] sm:$0xf]
        %v2042 = vld [vmem:[%s776 + $0x60] sm:$0xf]
        %v2043 = vld [vmem:[%s776 + $0x64] sm:$0xf]
        %v2044 = vld [vmem:[%s776 + $0x68] sm:$0xf]
        %v2045 = vld [vmem:[%s776 + $0x6c] sm:$0xf]
        %v2046 = vld [vmem:[%s776 + $0x70] sm:$0xf]
        %v2047 = vld [vmem:[%s776 + $0x74] sm:$0xf]
        %v2048 = vld [vmem:[%s776 + $0x78] sm:$0xf]
        %v2049 = vld [vmem:[%s776 + $0x7c] sm:$0xf]
        %v2050 = vld [vmem:[%s776 + $0x80] sm:$0xf]
        %v2051 = vld [vmem:[%s776 + $0x84] sm:$0xf]
        %v2052 = vld [vmem:[%s776 + $0x88] sm:$0xf]
        %v2053 = vld [vmem:[%s776 + $0x8c] sm:$0xf]
        %v2054 = vld [vmem:[%s776 + $0x90] sm:$0xf]
        %v2055 = vld [vmem:[%s776 + $0x94] sm:$0xf]
        %v2056 = vld [vmem:[%s776 + $0x98] sm:$0xf]
        %v2057 = vld [vmem:[%s776 + $0x9c] sm:$0xf]
        %v2058 = vld [vmem:[%s776 + $0xa0] sm:$0xf]
        %v2059 = vld [vmem:[%s776 + $0xa4] sm:$0xf]
        %v2060 = vld [vmem:[%s776 + $0xa8] sm:$0xf]
        %v2061 = vld [vmem:[%s776 + $0xac] sm:$0xf]
        %v2062 = vld [vmem:[%s776 + $0xb0] sm:$0xf]
        %v2063 = vld [vmem:[%s776 + $0xb4] sm:$0xf]
        %v2064 = vld [vmem:[%s776 + $0xb8] sm:$0xf]
        %v2065 = vld [vmem:[%s776 + $0xbc] sm:$0xf]
        %v2066 = vld [vmem:[%s776 + $0xc0] sm:$0xf]
        %v2067 = vld [vmem:[%s776 + $0xc4] sm:$0xf]
        %v2068 = vld [vmem:[%s776 + $0xc8] sm:$0xf]
        %v2069 = vld [vmem:[%s776 + $0xcc] sm:$0xf]
        %v2070 = vld [vmem:[%s776 + $0xd0] sm:$0xf]
        %v2071 = vld [vmem:[%s776 + $0xd4] sm:$0xf]
        %v2072 = vld [vmem:[%s776 + $0xd8] sm:$0xf]
        %v2073 = vld [vmem:[%s776 + $0xdc] sm:$0xf]
        %v2074 = vld [vmem:[%s776 + $0xe0] sm:$0xf]
        %v2075 = vld [vmem:[%s776 + $0xe4] sm:$0xf]
        %v2076 = vld [vmem:[%s776 + $0xe8] sm:$0xf]
        %v2077 = vld [vmem:[%s776 + $0xec] sm:$0xf]
        %v2078 = vld [vmem:[%s776 + $0xf0] sm:$0xf]
        %v2079 = vld [vmem:[%s776 + $0xf4] sm:$0xf]
        %v2080 = vld [vmem:[%s776 + $0xf8] sm:$0xf]
        %v2081 = vld [vmem:[%s776 + $0xfc] sm:$0xf]
        %v2082 = vld [vmem:[%s911] sm:$0x1]
        %v2083 = vpack.c.bf16 %v2014, %v2010
        %v2084 = vpack.c.bf16 %v2015, %v2011
        %v2085 = vpack.c.bf16 %v2016, %v2012
        %v2086 = vpack.c.bf16 %v2017, %v2013
        %v2088 = vlaneseq
        %v2089 = vshrl.u32 %v2088, 7
        %v2090 = vsub.s32 0, %v2089
        %v2091 = vrot.slane %v2082, %v2090
        %v2157 = vunpack.c.l.b16 %v2018
        %v2158 = vunpack.c.l.b16 %v2019
        %v2159 = vunpack.c.l.b16 %v2020
        %v2160 = vunpack.c.l.b16 %v2021
        %v2161 = vunpack.c.l.b16 %v2022
        %v2162 = vunpack.c.l.b16 %v2023
        %v2163 = vunpack.c.l.b16 %v2024
        %v2164 = vunpack.c.l.b16 %v2025
        %v2165 = vunpack.c.l.b16 %v2026
        %v2166 = vunpack.c.l.b16 %v2027
        %v2167 = vunpack.c.l.b16 %v2028
        %v2168 = vunpack.c.l.b16 %v2029
        %v2169 = vunpack.c.l.b16 %v2030
        %v2170 = vunpack.c.l.b16 %v2031
        %v2171 = vunpack.c.l.b16 %v2032
        %v2172 = vunpack.c.l.b16 %v2033
        %v2173 = vunpack.c.l.b16 %v2034
        %v2174 = vunpack.c.l.b16 %v2035
        %v2175 = vunpack.c.l.b16 %v2036
        %v2176 = vunpack.c.l.b16 %v2037
        %v2177 = vunpack.c.l.b16 %v2038
        %v2178 = vunpack.c.l.b16 %v2039
        %v2179 = vunpack.c.l.b16 %v2040
        %v2180 = vunpack.c.l.b16 %v2041
        %v2181 = vunpack.c.l.b16 %v2042
        %v2182 = vunpack.c.l.b16 %v2043
        %v2183 = vunpack.c.l.b16 %v2044
        %v2184 = vunpack.c.l.b16 %v2045
        %v2185 = vunpack.c.l.b16 %v2046
        %v2186 = vunpack.c.l.b16 %v2047
        %v2187 = vunpack.c.l.b16 %v2048
        %v2188 = vunpack.c.l.b16 %v2049
        %v2189 = vunpack.c.l.b16 %v2050
        %v2190 = vunpack.c.l.b16 %v2051
        %v2191 = vunpack.c.l.b16 %v2052
        %v2192 = vunpack.c.l.b16 %v2053
        %v2193 = vunpack.c.l.b16 %v2054
        %v2194 = vunpack.c.l.b16 %v2055
        %v2195 = vunpack.c.l.b16 %v2056
        %v2196 = vunpack.c.l.b16 %v2057
        %v2197 = vunpack.c.l.b16 %v2058
        %v2198 = vunpack.c.l.b16 %v2059
        %v2199 = vunpack.c.l.b16 %v2060
        %v2200 = vunpack.c.l.b16 %v2061
        %v2201 = vunpack.c.l.b16 %v2062
        %v2202 = vunpack.c.l.b16 %v2063
        %v2203 = vunpack.c.l.b16 %v2064
        %v2204 = vunpack.c.l.b16 %v2065
        %v2205 = vunpack.c.l.b16 %v2066
        %v2206 = vunpack.c.l.b16 %v2067
        %v2207 = vunpack.c.l.b16 %v2068
        %v2208 = vunpack.c.l.b16 %v2069
        %v2209 = vunpack.c.l.b16 %v2070
        %v2210 = vunpack.c.l.b16 %v2071
        %v2211 = vunpack.c.l.b16 %v2072
        %v2212 = vunpack.c.l.b16 %v2073
        %v2213 = vunpack.c.l.b16 %v2074
        %v2214 = vunpack.c.l.b16 %v2075
        %v2215 = vunpack.c.l.b16 %v2076
        %v2216 = vunpack.c.l.b16 %v2077
        %v2217 = vunpack.c.l.b16 %v2078
        %v2218 = vunpack.c.l.b16 %v2079
        %v2219 = vunpack.c.l.b16 %v2080
        %v2220 = vunpack.c.l.b16 %v2081
        %v2221 = vpack.c.b16 %v2158, %v2157
        %v2222 = vpack.c.b16 %v2160, %v2159
        %v2223 = vpack.c.b16 %v2162, %v2161
        %v2224 = vpack.c.b16 %v2164, %v2163
        %v2225 = vpack.c.b16 %v2166, %v2165
        %v2226 = vpack.c.b16 %v2168, %v2167
        %v2227 = vpack.c.b16 %v2170, %v2169
        %v2228 = vpack.c.b16 %v2172, %v2171
        %v2229 = vpack.c.b16 %v2174, %v2173
        %v2230 = vpack.c.b16 %v2176, %v2175
        %v2231 = vpack.c.b16 %v2178, %v2177
        %v2232 = vpack.c.b16 %v2180, %v2179
        %v2233 = vpack.c.b16 %v2182, %v2181
        %v2234 = vpack.c.b16 %v2184, %v2183
        %v2235 = vpack.c.b16 %v2186, %v2185
        %v2236 = vpack.c.b16 %v2188, %v2187
        %v2237 = vpack.c.b16 %v2190, %v2189
        %v2238 = vpack.c.b16 %v2192, %v2191
        %v2239 = vpack.c.b16 %v2194, %v2193
        %v2240 = vpack.c.b16 %v2196, %v2195
        %v2241 = vpack.c.b16 %v2198, %v2197
        %v2242 = vpack.c.b16 %v2200, %v2199
        %v2243 = vpack.c.b16 %v2202, %v2201
        %v2244 = vpack.c.b16 %v2204, %v2203
        %v2245 = vpack.c.b16 %v2206, %v2205
        %v2246 = vpack.c.b16 %v2208, %v2207
        %v2247 = vpack.c.b16 %v2210, %v2209
        %v2248 = vpack.c.b16 %v2212, %v2211
        %v2249 = vpack.c.b16 %v2214, %v2213
        %v2250 = vpack.c.b16 %v2216, %v2215
        %v2251 = vpack.c.b16 %v2218, %v2217
        %v2252 = vpack.c.b16 %v2220, %v2219
        %2285 = vmatprep.subr.bf16.mxu0 0
        %2286 = vmatpush1.bf16.msra.mxu0 %v2221
        %2287 = vmatprep.subr.bf16.mxu0 0
        %2288 = vmatpush1.bf16.msra.mxu0 %v2222
        %2289 = vmatprep.subr.bf16.mxu0 0
        %2290 = vmatpush1.bf16.msra.mxu0 %v2223
        %2291 = vmatprep.subr.bf16.mxu0 0
        %2292 = vmatpush1.bf16.msra.mxu0 %v2224
        %2293 = vmatprep.subr.bf16.mxu0 0
        %2294 = vmatpush1.bf16.msra.mxu0 %v2225
        %2295 = vmatprep.subr.bf16.mxu0 0
        %2296 = vmatpush1.bf16.msra.mxu0 %v2226
        %2297 = vmatprep.subr.bf16.mxu0 0
        %2298 = vmatpush1.bf16.msra.mxu0 %v2227
        %2299 = vmatprep.subr.bf16.mxu0 0
        %2300 = vmatpush1.bf16.msra.mxu0 %v2228
        %2301 = vmatprep.subr.bf16.mxu0 0
        %2302 = vmatpush1.bf16.msra.mxu0 %v2229
        %2303 = vmatprep.subr.bf16.mxu0 0
        %2304 = vmatpush1.bf16.msra.mxu0 %v2230
        %2305 = vmatprep.subr.bf16.mxu0 0
        %2306 = vmatpush1.bf16.msra.mxu0 %v2231
        %2307 = vmatprep.subr.bf16.mxu0 0
        %2308 = vmatpush1.bf16.msra.mxu0 %v2232
        %2309 = vmatprep.subr.bf16.mxu0 0
        %2310 = vmatpush1.bf16.msra.mxu0 %v2233
        %2311 = vmatprep.subr.bf16.mxu0 0
        %2312 = vmatpush1.bf16.msra.mxu0 %v2234
        %2313 = vmatprep.subr.bf16.mxu0 0
        %2314 = vmatpush1.bf16.msra.mxu0 %v2235
        %2315 = vmatprep.subr.bf16.mxu0 0
        %2316 = vmatpush1.bf16.msra.mxu0 %v2236
        %2317 = vmatprep.mubr.bf16.mxu0 %v2084
        %2318 = vmatmul.mubr.bf16.gmra.mrb[0].mxu0 %v2083
        %v2319 = vpop.f32.mrb[0].mxu0
        %v2320 = vadd.f32 %v2091, %v2319
        %v2321 = vpop.f32.mrb[0].mxu0
        %v2322 = vpop.f32.mrb[0].mxu0
        %v2323 = vadd.f32 %v2091, %v2322
        %v2324 = vpop.f32.mrb[0].mxu0
        %2325 = vdwg.mxu0
        %2326 = vmatprep.subr.bf16.mxu0 0
        %2327 = vmatpush1.bf16.msra.mxu0 %v2237
        %2328 = vmatprep.subr.bf16.mxu0 0
        %2329 = vmatpush1.bf16.msra.mxu0 %v2238
        %2330 = vmatprep.subr.bf16.mxu0 0
        %2331 = vmatpush1.bf16.msra.mxu0 %v2239
        %2332 = vmatprep.subr.bf16.mxu0 0
        %2333 = vmatpush1.bf16.msra.mxu0 %v2240
        %2334 = vmatprep.subr.bf16.mxu0 0
        %2335 = vmatpush1.bf16.msra.mxu0 %v2241
        %2336 = vmatprep.subr.bf16.mxu0 0
        %2337 = vmatpush1.bf16.msra.mxu0 %v2242
        %2338 = vmatprep.subr.bf16.mxu0 0
        %2339 = vmatpush1.bf16.msra.mxu0 %v2243
        %2340 = vmatprep.subr.bf16.mxu0 0
        %2341 = vmatpush1.bf16.msra.mxu0 %v2244
        %2342 = vmatprep.subr.bf16.mxu0 0
        %2343 = vmatpush1.bf16.msra.mxu0 %v2245
        %2344 = vmatprep.subr.bf16.mxu0 0
        %2345 = vmatpush1.bf16.msra.mxu0 %v2246
        %2346 = vmatprep.subr.bf16.mxu0 0
        %2347 = vmatpush1.bf16.msra.mxu0 %v2247
        %2348 = vmatprep.subr.bf16.mxu0 0
        %2349 = vmatpush1.bf16.msra.mxu0 %v2248
        %2350 = vmatprep.subr.bf16.mxu0 0
        %2351 = vmatpush1.bf16.msra.mxu0 %v2249
        %2352 = vmatprep.subr.bf16.mxu0 0
        %2353 = vmatpush1.bf16.msra.mxu0 %v2250
        %2354 = vmatprep.subr.bf16.mxu0 0
        %2355 = vmatpush1.bf16.msra.mxu0 %v2251
        %2356 = vmatprep.subr.bf16.mxu0 0
        %2357 = vmatpush1.bf16.msra.mxu0 %v2252
        %2358 = vmatprep.mubr.bf16.mxu0 %v2086
        %2359 = vmatmul.mubr.bf16.gmra.mrb[0].mxu0 %v2085
        %v2360 = vpop.f32.mrb[0].mxu0
        %v2361 = vadd.f32 %v2320, %v2360
        %v2362 = vpop.f32.mrb[0].mxu0
        %v2363 = vpop.f32.mrb[0].mxu0
        %v2364 = vadd.f32 %v2323, %v2363
        %v2365 = vpop.f32.mrb[0].mxu0
        %2366 = vdwg.mxu0
        %v2367 = vadd.f32 %v1643, %v2361
        %v2368 = vadd.f32 %v1644, %v2364
        %v2369 = vld [vmem:[%s784] sm:$0x1]
        %v2370 = vld [vmem:[%s792] sm:$0x1]
        %2371 = vadd.xlane.f32.xlu0 %v2367
        %v2372 = vpop.xlane.xlu0 %2371
        %2373 = vadd.xlane.f32.xlu0 %v2368
        %v2374 = vpop.xlane.xlu0 %2373
        %v2375 = vmul.f32 %v2372, %v1610
        %v2376 = vmul.f32 %v2374, %v1610
        %v2377 = vsub.f32 %v2367, %v2375
        %v2378 = vsub.f32 %v2368, %v2376
        %v2379 = vmul.f32 %v2377, %v2377
        %v2380 = vmul.f32 %v2378, %v2378
        %2381 = vadd.xlane.f32.xlu0 %v2379
        %v2382 = vpop.xlane.xlu0 %2381
        %2383 = vadd.xlane.f32.xlu0 %v2380
        %v2384 = vpop.xlane.xlu0 %2383
        %v2385 = vmul.f32 %v2382, %v1610
        %v2386 = vmul.f32 %v2384, %v1610
        %v2387 = vadd.f32 %v2385, 1e-05
        %v2388 = vadd.f32 %v2386, 1e-05
        %v2389 = vrsqrt.pop %v2387
        %v2390 = vrsqrt.pop %v2388
        %v2391 = vmul.f32 %v2377, %v2389
        %v2392 = vmul.f32 %v2378, %v2390
        %v2394 = vlaneseq
        %v2395 = vshrl.u32 %v2394, 7
        %v2396 = vsub.s32 0, %v2395
        %v2397 = vrot.slane %v2369, %v2396
        %v2399 = vmul.f32 %v2391, %v2397
        %v2400 = vmul.f32 %v2392, %v2397
        %v2402 = vlaneseq
        %v2403 = vshrl.u32 %v2402, 7
        %v2404 = vsub.s32 0, %v2403
        %v2405 = vrot.slane %v2370, %v2404
        %v2407 = vadd.f32 %v2399, %v2405
        %v2408 = vadd.f32 %v2400, %v2405
        %2409 = vst [vmem:[#allocation2] sm:$0xff] %v2407
        %2410 = vst [vmem:[#allocation2 + $0x8] sm:$0xff] %v2408
        %p2411 = scmp.eq.s32.totalorder %s33, 1
        // Predicated region
        $region141: #{codebert_classifier_forward.1} parent=91 // pred_check
          %p2412 = pneg %p2411
        $region142: #{codebert_classifier_forward.1} parent=91 // pred_check_branch
          %2414 = sbr.rel (%p2412) target = $region144
        $region143: #{codebert_classifier_forward.1} parent=91 // pred_region
          %v2416 = vrot.slane %v2408, 7
          %vm2418 = vcmask 1040384
          %v2419 = vsel %vm2418, %v2407, %v2416
          %v2420 = vld [vmem:[#allocation15] sm:$0xf]
          %v2421 = vld [vmem:[#allocation15 + $0x4] sm:$0xf]
          %v2422 = vld [vmem:[#allocation15 + $0x8] sm:$0xf]
          %v2423 = vld [vmem:[#allocation15 + $0xc] sm:$0xf]
          %v2424 = vld [vmem:[#allocation15 + $0x10] sm:$0xf]
          %v2425 = vld [vmem:[#allocation15 + $0x14] sm:$0xf]
          %v2426 = vld [vmem:[#allocation15 + $0x18] sm:$0xf]
          %v2427 = vld [vmem:[#allocation15 + $0x1c] sm:$0xf]
          %v2428 = vld [vmem:[#allocation15 + $0x20] sm:$0xf]
          %v2429 = vld [vmem:[#allocation15 + $0x24] sm:$0xf]
          %v2430 = vld [vmem:[#allocation15 + $0x28] sm:$0xf]
          %v2431 = vld [vmem:[#allocation15 + $0x2c] sm:$0xf]
          %v2432 = vld [vmem:[#allocation15 + $0x30] sm:$0xf]
          %v2433 = vld [vmem:[#allocation15 + $0x34] sm:$0xf]
          %v2434 = vld [vmem:[#allocation15 + $0x38] sm:$0xf]
          %v2435 = vld [vmem:[#allocation15 + $0x3c] sm:$0xf]
          %v2436 = vld [vmem:[#allocation16] sm:$0x1]
          %v2437 = vpack.c.bf16 %v2419, %v2419
          %v2439 = vlaneseq
          %v2440 = vshrl.u32 %v2439, 7
          %v2441 = vsub.s32 0, %v2440
          %v2442 = vrot.slane %v2436, %v2441
          %v2460 = vunpack.c.l.b16 %v2420
          %v2461 = vunpack.c.l.b16 %v2421
          %v2462 = vunpack.c.l.b16 %v2422
          %v2463 = vunpack.c.l.b16 %v2423
          %v2464 = vunpack.c.l.b16 %v2424
          %v2465 = vunpack.c.l.b16 %v2425
          %v2466 = vunpack.c.l.b16 %v2426
          %v2467 = vunpack.c.l.b16 %v2427
          %v2468 = vunpack.c.l.b16 %v2428
          %v2469 = vunpack.c.l.b16 %v2429
          %v2470 = vunpack.c.l.b16 %v2430
          %v2471 = vunpack.c.l.b16 %v2431
          %v2472 = vunpack.c.l.b16 %v2432
          %v2473 = vunpack.c.l.b16 %v2433
          %v2474 = vunpack.c.l.b16 %v2434
          %v2475 = vunpack.c.l.b16 %v2435
          %v2476 = vpack.c.b16 %v2461, %v2460
          %v2477 = vpack.c.b16 %v2463, %v2462
          %v2478 = vpack.c.b16 %v2465, %v2464
          %v2479 = vpack.c.b16 %v2467, %v2466
          %v2480 = vpack.c.b16 %v2469, %v2468
          %v2481 = vpack.c.b16 %v2471, %v2470
          %v2482 = vpack.c.b16 %v2473, %v2472
          %v2483 = vpack.c.b16 %v2475, %v2474
          %2492 = vmatprep.subr.bf16.mxu0 0
          %2493 = vmatpush1.bf16.msra.mxu0 %v2476
          %2494 = vmatprep.subr.bf16.mxu0 0
          %2495 = vmatpush1.bf16.msra.mxu0 %v2477
          %2496 = vmatprep.subr.bf16.mxu0 0
          %2497 = vmatpush1.bf16.msra.mxu0 %v2478
          %2498 = vmatprep.subr.bf16.mxu0 0
          %2499 = vmatpush1.bf16.msra.mxu0 %v2479
          %2500 = vmatprep.subr.bf16.mxu0 0
          %2501 = vmatpush1.bf16.msra.mxu0 %v2480
          %2502 = vmatprep.subr.bf16.mxu0 0
          %2503 = vmatpush1.bf16.msra.mxu0 %v2481
          %2504 = vmatprep.subr.bf16.mxu0 0
          %2505 = vmatpush1.bf16.msra.mxu0 %v2482
          %2506 = vmatprep.subr.bf16.mxu0 0
          %2507 = vmatpush1.bf16.msra.mxu0 %v2483
          %2508 = vmatprep.subr.bf16.mxu0 0
          %2509 = vmatpush1.bf16.msra.mxu0 0
          %2510 = vmatprep.subr.bf16.mxu0 0
          %2511 = vmatpush1.bf16.msra.mxu0 0
          %2512 = vmatprep.subr.bf16.mxu0 0
          %2513 = vmatpush1.bf16.msra.mxu0 0
          %2514 = vmatprep.subr.bf16.mxu0 0
          %2515 = vmatpush1.bf16.msra.mxu0 0
          %2516 = vmatprep.subr.bf16.mxu0 0
          %2517 = vmatpush1.bf16.msra.mxu0 0
          %2518 = vmatprep.subr.bf16.mxu0 0
          %2519 = vmatpush1.bf16.msra.mxu0 0
          %2520 = vmatprep.subr.bf16.mxu0 0
          %2521 = vmatpush1.bf16.msra.mxu0 0
          %2522 = vmatprep.subr.bf16.mxu0 0
          %2523 = vmatpush1.bf16.msra.mxu0 0
          %2524 = vmatprep.mubr.bf16.mxu0 0
          %2525 = vmatmul.mubr.bf16.gmra.mrb[0].mxu0 %v2437
          %v2526 = vpop.f32.mrb[0].mxu0
          %v2527 = vadd.f32 %v2442, %v2526
          %v2528 = vpop.f32.mrb[0].mxu0
          %v2529 = vpop.f32.mrb[0].mxu0
          %v2530 = vpop.f32.mrb[0].mxu0
          %2531 = vdwg.mxu0
          %2532 = vst [vmem:[#allocation18] sm:$0x3] %v2527
        $region144: #{codebert_classifier_forward.1} parent=91 // pred_fallthru
          _
        // Predicated region
        $region145: #{codebert_classifier_forward.1} parent=91 // pred_check
          %p2533 = pneg %p484
        $region146: #{codebert_classifier_forward.1} parent=91 // pred_check_branch
          %2535 = sbr.rel (%p2533) target = $region148
        $region147: #{codebert_classifier_forward.1} parent=91 // pred_region
          %s2537 = ssub.s32 32, 32
          %2538 = vsyncadd [#allocation5], %s2537
          %s2540 = sshll.u32 [#allocation18], 4
          %s2541 = int_to_ptr.vmem [resolvable:$true] %s2540
          %2543 = dma.vmem_to_hbm [thread:$0]  %s2541, 32, %s18, [#allocation5]
        $region148: #{codebert_classifier_forward.1} parent=91 // pred_fallthru
          _
        // Predicated region
        $region149: #{codebert_classifier_forward.1} parent=91 // pred_check
          %p2544 = pneg %p484
        $region150: #{codebert_classifier_forward.1} parent=91 // pred_check_branch
          %2546 = sbr.rel (%p2544) target = $region152
        $region151: #{codebert_classifier_forward.1} parent=91 // pred_region
          %2547 = dma.done [#allocation5], 32
        $region152: #{codebert_classifier_forward.1} parent=91 // pred_fallthru
          _
      $region92: #{codebert_classifier_forward.1} parent=5 // pred_fallthru
        _
      %p2548 = scmp.le.s32.totalorder 2, %s28
      // Predicated region
      $region153: #{codebert_classifier_forward.1} parent=5 // pred_check
        %p2549 = pneg %p2548
      $region154: #{codebert_classifier_forward.1} parent=5 // pred_check_branch
        %2551 = sbr.rel (%p2549) target = $region156
      $region155: #{codebert_classifier_forward.1} parent=5 // pred_region
        %s2552 = ssub.s32 %s28, 2
      $region156: #{codebert_classifier_forward.1} parent=5 // pred_fallthru
        _
    $region6: #{codebert_classifier_forward.1} parent=1 // loop_footer
      %s32 = sadd.s32 1, %s28
    $region7: #{codebert_classifier_forward.1} parent=1 // loop_footer_branch
      %27 = sbr.rel target = $region3
    $region8: #{codebert_classifier_forward.1} parent=1 // loop_exit
      _
    %2553 = vsyncpa [#allocation4], 1
    %s2554 = scalar_lea.sflag [#allocation4], 1
    %2555 = vsyncpa %s2554, 1
    %2556 = vsyncpa [#allocation7], 1
    %2557 = vsyncpa [#allocation17], 1
    %2558 = vsyncpa [#allocation5], 1
    %s2559 = scalar_lea.sflag [#allocation5], 1
    %2560 = vsyncpa %s2559, 1

</llo_original>
